<compile_context>
chip_gen: v7x
topology: tpu7x:2x2x1
jax: 0.10.0
libtpu: 0.0.40
codegen_flags: <defaults>
</compile_context>

<pallas_src>
import functools

import jax
import jax.numpy as jnp
from jax.experimental import pallas as pl
from jax.experimental.pallas import tpu as pltpu


def _edge_update_kernel(a_ref, b_ref, struct_ref, mask_ref, ws_ref, bu_ref, out_ref,
                        *, he, chunk_i, lane_dense):
    """One (tile_i, tile_j) block of the N x N edge matrix.

    a_ref     : [tile_i, 3*He] f32      pair term for row i  (+ br|bz|bc folded in)
    b_ref     : [tile_j, 3*He] f32      pair term for col j
    struct_ref: [tile_i, tile_j*He] (lane-dense) or [tile_i, tile_j, He]  stream dtype
    mask_ref  : [tile_i, tile_j]    stream dtype (exact 0/1)
    ws_ref    : [He, 3*He]          stream dtype   fused [Wr_s | Wz_s | Wu]
    bu_ref    : [1, He] f32         u-bias only
    out_ref   : same layout as struct_ref, out dtype
    """
    tile_i = mask_ref.shape[0]
    tile_j = mask_ref.shape[1]
    num_chunks = tile_i // chunk_i

    # Hoisted loop invariants (loaded once per grid step).
    ws = ws_ref[...]                                 # (He, 3He)
    bu = bu_ref[...].reshape(1, 1, he)               # (1, 1, He) f32
    b_all = b_ref[...][None, :, :]                   # (1, tile_j, 3He) f32

    def body(c, carry):
        i0 = pl.multiple_of(c * chunk_i, chunk_i)

        if lane_dense:
            # (ci, tile_j*He) -> (ci, tile_j, He): relayout on the idle XLU.
            struct3 = struct_ref[pl.ds(i0, chunk_i), :].reshape(chunk_i, tile_j, he)
        else:
            struct3 = struct_ref[pl.ds(i0, chunk_i), :, :]
        mask3 = mask_ref[pl.ds(i0, chunk_i), :][:, :, None]      # (ci, tj, 1)  0/1
        a3 = a_ref[pl.ds(i0, chunk_i), :][:, None, :]            # (ci, 1, 3He) f32

        masked = struct3 * mask3                                 # exact (0/1 mask)

        # Single fused struct-side matmul [Wr_s | Wz_s | Wu], f32 accumulation.
        # (Leading-dim collapse/split only; lane dim untouched -> free reshapes.)
        masked2 = masked.reshape(chunk_i * tile_j, he)
        s_lin3 = jnp.dot(masked2, ws, preferred_element_type=jnp.float32
                         ).reshape(chunk_i, tile_j, 3 * he)

        # r, z gates: pair term A[i] + B[j] broadcast-added in place (no p_lin temp).
        rz = jax.nn.sigmoid(
            s_lin3[..., : 2 * he] + a3[..., : 2 * he] + b_all[..., : 2 * he])
        r = rz[..., :he]
        z = rz[..., he:]

        # u = tanh(c_pair + r * (u_struct + bu))   (bu added to the u slice only)
        u = jnp.tanh(a3[..., 2 * he:] + b_all[..., 2 * he:]
                     + r * (s_lin3[..., 2 * he:] + bu))

        # new_h = z*struct + (1-z)*u  ==  u + z*(struct - u)
        new_h = u + z * (masked.astype(jnp.float32) - u)         # (ci, tj, He) f32

        if lane_dense:
            out_ref[pl.ds(i0, chunk_i), :] = (
                new_h.reshape(chunk_i, tile_j * he).astype(out_ref.dtype))
        else:
            out_ref[pl.ds(i0, chunk_i), :, :] = new_h.astype(out_ref.dtype)
        return carry

    jax.lax.fori_loop(0, num_chunks, body, 0)


def _init_linear(key, in_features, out_features):
    """Deterministic nn.Linear-style init: U(-1/sqrt(in), 1/sqrt(in))."""
    kw, kb = jax.random.split(key)
    bound = 1.0 / jnp.sqrt(jnp.float32(in_features))
    w = jax.random.uniform(kw, (out_features, in_features), jnp.float32, -bound, bound)
    b = jax.random.uniform(kb, (out_features,), jnp.float32, -bound, bound)
    return w, b


def make_edge_update_params(key, node_hidden_size, edge_hidden_size):
    k_r, k_z, k_c, k_u = jax.random.split(key, 4)
    in_rz = 2 * node_hidden_size + edge_hidden_size
    wr, br = _init_linear(k_r, in_rz, edge_hidden_size)
    wz, bz = _init_linear(k_z, in_rz, edge_hidden_size)
    wc, bc = _init_linear(k_c, 2 * node_hidden_size, edge_hidden_size)
    wu, bu = _init_linear(k_u, edge_hidden_size, edge_hidden_size)
    return dict(wr=wr, br=br, wz=wz, bz=bz, wc=wc, bc=bc, wu=wu, bu=bu)


def _round_up(x, m):
    return ((x + m - 1) // m) * m


def edge_update_forward(params, nodes, const_path, struct_path, edge_label_mask,
                        *, stream_dtype=jnp.bfloat16, out_dtype=jnp.float32,
                        lane_dense=True, vmem_limit_bytes=48 * 1024 * 1024):
    """Pallas implementation of EdgeUpdateModel.forward.

    nodes:            [N, Hn] float32
    const_path:       [N, N, He]  (unused, kept for signature parity)
    struct_path:      [N, N, He] float32
    edge_label_mask:  [N, N] float32
    returns new_h:    [N, N, He] out_dtype (default float32)
    """
    del const_path  # never used by the PyTorch forward
    n, hn = nodes.shape
    he = struct_path.shape[-1]

    nodes = nodes.astype(jnp.float32)
    wr, wz, wc, wu = params["wr"], params["wz"], params["wc"], params["wu"]
    br, bz, bc, bu = params["br"], params["bz"], params["bc"], params["bu"]

    # ---- fused weights (x @ W form, i.e. transposed nn.Linear weights) ----
    # pair-side columns: [r | z | c]; struct-side columns: [r | z | u].
    wp = jnp.concatenate([wr[:, : 2 * hn].T, wz[:, : 2 * hn].T, wc.T], axis=1)  # [2Hn,3He]
    ws = jnp.concatenate([wr[:, 2 * hn:].T, wz[:, 2 * hn:].T, wu.T], axis=1)    # [He, 3He]
    bp = jnp.concatenate([br, bz, bc]).astype(jnp.float32)                      # [3He]

    # ---- separable pair term: pair(i,j) @ Wp + bp == A[i] + B[j] (tiny, f32, XLA) ----
    a_tbl = (nodes @ wp[:hn] + bp[None, :]).astype(jnp.float32)   # [N, 3He]
    b_tbl = (nodes @ wp[hn:]).astype(jnp.float32)                 # [N, 3He]
    bu2 = bu.reshape(1, he).astype(jnp.float32)                   # u-bias only

    # ---- bounded tiles for any N (pad in the wrapper; slice the output back) ----
    if n > 128:
        tile = 128
        n_pad = _round_up(n, tile)
    else:
        n_pad = _round_up(n, 8)
        tile = n_pad
    chunk_i = 16 if tile % 16 == 0 else 8
    chunk_i = min(chunk_i, tile)
    grid = (n_pad // tile, n_pad // tile)

    struct = struct_path.astype(stream_dtype)            # dominant HBM stream
    mask = edge_label_mask.astype(stream_dtype)          # 0/1 -> exact in bf16
    if n_pad != n:
        p = n_pad - n
        a_tbl = jnp.pad(a_tbl, ((0, p), (0, 0)))
        b_tbl = jnp.pad(b_tbl, ((0, p), (0, 0)))
        struct = jnp.pad(struct, ((0, p), (0, p), (0, 0)))
        mask = jnp.pad(mask, ((0, p), (0, p)))
    ws_s = ws.astype(stream_dtype)

    kernel = functools.partial(_edge_update_kernel, he=he, chunk_i=chunk_i,
                               lane_dense=lane_dense)

    if lane_dense:
        struct_in = struct.reshape(n_pad, n_pad * he)        # free wrapper reshape
        struct_spec = pl.BlockSpec((tile, tile * he), lambda i, j: (i, j))
        out_spec = pl.BlockSpec((tile, tile * he), lambda i, j: (i, j))
        out_shape = jax.ShapeDtypeStruct((n_pad, n_pad * he), out_dtype)
    else:
        struct_in = struct
        struct_spec = pl.BlockSpec((tile, tile, he), lambda i, j: (i, j, 0))
        out_spec = pl.BlockSpec((tile, tile, he), lambda i, j: (i, j, 0))
        out_shape = jax.ShapeDtypeStruct((n_pad, n_pad, he), out_dtype)

    out = pl.pallas_call(
        kernel,
        out_shape=out_shape,
        grid=grid,
        in_specs=[
            pl.BlockSpec((tile, 3 * he), lambda i, j: (i, 0)),   # A table (row i)
            pl.BlockSpec((tile, 3 * he), lambda i, j: (j, 0)),   # B table (col j)
            struct_spec,                                         # struct (lane-dense)
            pl.BlockSpec((tile, tile), lambda i, j: (i, j)),     # mask, 2-D stream dtype
            pl.BlockSpec((he, 3 * he), lambda i, j: (0, 0)),     # fused Ws
            pl.BlockSpec((1, he), lambda i, j: (0, 0)),          # bu
        ],
        out_specs=out_spec,
        compiler_params=pltpu.CompilerParams(
            dimension_semantics=("parallel", "parallel"),
            vmem_limit_bytes=vmem_limit_bytes,
        ),
    )(a_tbl, b_tbl, struct_in, mask, ws_s, bu2)

    new_h = out.reshape(n_pad, n_pad, he)
    if n_pad != n:
        new_h = new_h[:n, :n, :]
    return new_h


def run_forward(params, nodes, const_path, struct_path, edge_label_mask, **kw):
    """jit + run.  If the lane-dense relayout is rejected by this jax/libtpu
    version's Mosaic lowering, fall back to the proven 3-D block layout."""
    try:
        fn = jax.jit(functools.partial(edge_update_forward, params,
                                       lane_dense=True, **kw))
        return jax.block_until_ready(fn(nodes, const_path, struct_path, edge_label_mask))
    except Exception:
        fn = jax.jit(functools.partial(edge_update_forward, params,
                                       lane_dense=False, **kw))
        return jax.block_until_ready(fn(nodes, const_path, struct_path, edge_label_mask))


def edge_update_reference(params, nodes, const_path, struct_path, edge_label_mask):
    """Pure-JAX f32 reference matching the PyTorch forward exactly (unfused weights)."""
    del const_path
    n = nodes.shape[0]
    nodes_exp = jnp.broadcast_to(nodes[:, None, :], (n, n, nodes.shape[1]))
    pair = jnp.concatenate([nodes_exp, jnp.swapaxes(nodes_exp, 0, 1)], axis=-1)
    struct = struct_path * edge_label_mask[..., None]
    rz_in = jnp.concatenate([pair, struct], axis=-1)
    r = jax.nn.sigmoid(rz_in @ params["wr"].T + params["br"])
    z = jax.nn.sigmoid(rz_in @ params["wz"].T + params["bz"])
    u = jnp.tanh(pair @ params["wc"].T + params["bc"]
                 + r * (struct @ params["wu"].T + params["bu"]))
    return z * struct + (1.0 - z) * u


if __name__ == "__main__":
    node_hidden_size = 32
    edge_hidden_size = 32

    key = jax.random.PRNGKey(0)
    k_params, k_data = jax.random.split(key)
    params = make_edge_update_params(k_params, node_hidden_size, edge_hidden_size)

    def make_inputs(k, n):
        k1, k2, k3, k4 = jax.random.split(k, 4)
        nodes = jax.random.normal(k1, (n, node_hidden_size), jnp.float32)
        const_path = jax.random.normal(k2, (n, n, edge_hidden_size), jnp.float32)
        struct_path = jax.random.normal(k3, (n, n, edge_hidden_size), jnp.float32)
        mask = (jax.random.uniform(k4, (n, n)) > 0.5).astype(jnp.float32)
        return nodes, const_path, struct_path, mask

    k8, k20 = jax.random.split(k_data)

    # 1) bit-faithful path (f32 streaming), node_num = 8 (single chunk, no padding).
    inp8 = make_inputs(k8, 8)
    ref8 = edge_update_reference(params, *inp8)
    out8 = run_forward(params, *inp8, stream_dtype=jnp.float32)
    assert out8.shape == ref8.shape
    assert jnp.allclose(out8, ref8, atol=1e-4, rtol=1e-4), "f32 kernel mismatch"

    # 2) default fast path: bf16 streaming of struct/Ws/mask, f32 math & output.
    out8b = run_forward(params, *inp8)
    assert out8b.shape == ref8.shape
    assert float(jnp.max(jnp.abs(out8b - ref8))) < 7.5e-2, "bf16 kernel mismatch"

    # 3) f32 path exercising wrapper padding (20 -> 24) and the multi-chunk loop.
    inp20 = make_inputs(k20, 20)
    ref20 = edge_update_reference(params, *inp20)
    out20 = run_forward(params, *inp20, stream_dtype=jnp.float32)
    assert out20.shape == ref20.shape
    assert jnp.allclose(out20, ref20, atol=1e-4, rtol=1e-4), "padded/tiled kernel mismatch"

    print("KERNEL_OK")
</pallas_src>

<mosaic_0001>
module attributes {stable_mosaic.version = 11 : i64} {
  func.func @_edge_update_kernel(%arg0: i32, %arg1: i32, %arg2: memref<8x96xf32, #tpu.memory_space<vmem>>, %arg3: memref<8x96xf32, #tpu.memory_space<vmem>>, %arg4: memref<8x256xf32, #tpu.memory_space<vmem>>, %arg5: memref<8x8xf32, #tpu.memory_space<vmem>>, %arg6: memref<32x96xf32, #tpu.memory_space<vmem>>, %arg7: memref<1x32xf32, #tpu.memory_space<vmem>>, %arg8: memref<8x256xf32, #tpu.memory_space<vmem>>) attributes {dimension_semantics = [#tpu.dimension_semantics<parallel>, #tpu.dimension_semantics<parallel>], iteration_bounds = array<i64: 1, 1>, scalar_prefetch = 0 : i64, scratch_operands = 0 : i64, tpu.core_type = #tpu.core_type<tc>, window_params = [{transform_indices = @transform_0, window_bounds = array<i64: 8, 96>}, {transform_indices = @transform_1, window_bounds = array<i64: 8, 96>}, {transform_indices = @transform_2, window_bounds = array<i64: 8, 256>}, {transform_indices = @transform_3, window_bounds = array<i64: 8, 8>}, {pipeline_mode = #tpu.pipeline_mode<synchronous>, transform_indices = @transform_4, window_bounds = array<i64: 32, 96>}, {pipeline_mode = #tpu.pipeline_mode<synchronous>, transform_indices = @transform_5, window_bounds = array<i64: 1, 32>}, {transform_indices = @transform_6, window_bounds = array<i64: 8, 256>}]} {
    %c0 = arith.constant 0 : index
    %c0_0 = arith.constant 0 : index
    %0 = vector.load %arg6[%c0, %c0_0] : memref<32x96xf32, #tpu.memory_space<vmem>>, vector<32x96xf32>
    %c0_1 = arith.constant 0 : index
    %c0_2 = arith.constant 0 : index
    %1 = vector.load %arg7[%c0_1, %c0_2] : memref<1x32xf32, #tpu.memory_space<vmem>>, vector<1x32xf32>
    %2 = vector.shape_cast %1 : vector<1x32xf32> to vector<1x1x32xf32>
    %c0_3 = arith.constant 0 : index
    %c0_4 = arith.constant 0 : index
    %3 = vector.load %arg3[%c0_3, %c0_4] : memref<8x96xf32, #tpu.memory_space<vmem>>, vector<8x96xf32>
    %4 = vector.shape_cast %3 : vector<8x96xf32> to vector<1x8x96xf32>
    %c0_i32 = arith.constant 0 : i32
    %c8_i32 = arith.constant 8 : i32
    %5 = arith.muli %c0_i32, %c8_i32 : i32
    %6 = tpu.assume_multiple %5, 8 : i32
    %7 = arith.index_cast %6 : i32 to index
    %c0_5 = arith.constant 0 : index
    %8 = vector.load %arg4[%7, %c0_5] : memref<8x256xf32, #tpu.memory_space<vmem>>, vector<8x256xf32>
    %9 = vector.shape_cast %8 : vector<8x256xf32> to vector<8x8x32xf32>
    %10 = arith.index_cast %6 : i32 to index
    %c0_6 = arith.constant 0 : index
    %11 = vector.load %arg5[%10, %c0_6] : memref<8x8xf32, #tpu.memory_space<vmem>>, vector<8x8xf32>
    %12 = vector.shape_cast %11 : vector<8x8xf32> to vector<8x8x1xf32>
    %13 = arith.index_cast %6 : i32 to index
    %c0_7 = arith.constant 0 : index
    %14 = vector.load %arg2[%13, %c0_7] : memref<8x96xf32, #tpu.memory_space<vmem>>, vector<8x96xf32>
    %15 = vector.shape_cast %14 : vector<8x96xf32> to vector<8x1x96xf32>
    %16 = vector.broadcast %12 : vector<8x8x1xf32> to vector<8x8x32xf32>
    %17 = arith.mulf %9, %16 : vector<8x8x32xf32>
    %18 = vector.shape_cast %17 : vector<8x8x32xf32> to vector<64x32xf32>
    %cst = arith.constant dense<0.000000e+00> : vector<64x96xf32>
    %19 = tpu.matmul %18, %0, %cst {dimension_numbers = #tpu.dot_dimension_numbers<[1], [0], [0], [1], [0, 0, 1, 1], [], []>} : vector<64x32xf32>, vector<32x96xf32>, vector<64x96xf32> -> vector<64x96xf32>
    %20 = vector.shape_cast %19 : vector<64x96xf32> to vector<8x8x96xf32>
    %21 = vector.extract_strided_slice %20 {offsets = [0, 0, 0], sizes = [8, 8, 64], strides = [1, 1, 1]} : vector<8x8x96xf32> to vector<8x8x64xf32>
    %22 = vector.extract_strided_slice %15 {offsets = [0, 0, 0], sizes = [8, 1, 64], strides = [1, 1, 1]} : vector<8x1x96xf32> to vector<8x1x64xf32>
    %23 = vector.broadcast %22 : vector<8x1x64xf32> to vector<8x8x64xf32>
    %24 = arith.addf %21, %23 : vector<8x8x64xf32>
    %25 = vector.extract_strided_slice %4 {offsets = [0, 0, 0], sizes = [1, 8, 64], strides = [1, 1, 1]} : vector<1x8x96xf32> to vector<1x8x64xf32>
    %26 = vector.broadcast %25 : vector<1x8x64xf32> to vector<8x8x64xf32>
    %27 = arith.addf %24, %26 : vector<8x8x64xf32>
    %28 = arith.negf %27 : vector<8x8x64xf32>
    %29 = math.exp %28 : vector<8x8x64xf32>
    %cst_8 = arith.constant 1.000000e+00 : f32
    %30 = vector.broadcast %cst_8 : f32 to vector<8x8x64xf32>
    %31 = arith.addf %30, %29 : vector<8x8x64xf32>
    %32 = arith.divf %30, %31 : vector<8x8x64xf32>
    %33 = vector.extract_strided_slice %32 {offsets = [0, 0, 0], sizes = [8, 8, 32], strides = [1, 1, 1]} : vector<8x8x64xf32> to vector<8x8x32xf32>
    %34 = vector.extract_strided_slice %32 {offsets = [0, 0, 32], sizes = [8, 8, 32], strides = [1, 1, 1]} : vector<8x8x64xf32> to vector<8x8x32xf32>
    %35 = vector.extract_strided_slice %15 {offsets = [0, 0, 64], sizes = [8, 1, 32], strides = [1, 1, 1]} : vector<8x1x96xf32> to vector<8x1x32xf32>
    %36 = vector.extract_strided_slice %4 {offsets = [0, 0, 64], sizes = [1, 8, 32], strides = [1, 1, 1]} : vector<1x8x96xf32> to vector<1x8x32xf32>
    %37 = vector.broadcast %35 : vector<8x1x32xf32> to vector<8x8x32xf32>
    %38 = vector.broadcast %36 : vector<1x8x32xf32> to vector<8x8x32xf32>
    %39 = arith.addf %37, %38 : vector<8x8x32xf32>
    %40 = vector.extract_strided_slice %20 {offsets = [0, 0, 64], sizes = [8, 8, 32], strides = [1, 1, 1]} : vector<8x8x96xf32> to vector<8x8x32xf32>
    %41 = vector.broadcast %2 : vector<1x1x32xf32> to vector<8x8x32xf32>
    %42 = arith.addf %40, %41 : vector<8x8x32xf32>
    %43 = arith.mulf %33, %42 : vector<8x8x32xf32>
    %44 = arith.addf %39, %43 : vector<8x8x32xf32>
    %45 = math.tanh %44 : vector<8x8x32xf32>
    %46 = arith.subf %17, %45 : vector<8x8x32xf32>
    %47 = arith.mulf %34, %46 : vector<8x8x32xf32>
    %48 = arith.addf %45, %47 : vector<8x8x32xf32>
    %49 = vector.shape_cast %48 : vector<8x8x32xf32> to vector<8x256xf32>
    %50 = arith.index_cast %6 : i32 to index
    %c0_9 = arith.constant 0 : index
    %51 = vector.load %arg8[%50, %c0_9] : memref<8x256xf32, #tpu.memory_space<vmem>>, vector<8x256xf32>
    tpu.vector_store %arg8[%50, %c0_9], %49 {strides = array<i32>} : memref<8x256xf32, #tpu.memory_space<vmem>>, vector<8x256xf32>,
    %c1_i32 = arith.constant 1 : i32
    return
  }
  func.func @transform_0(%arg0: i32, %arg1: i32) -> (i32, i32) {
    %c0_i32 = arith.constant 0 : i32
    %c0_i32_0 = arith.constant 0 : i32
    return %arg0, %c0_i32 : i32, i32
  }
  func.func @transform_1(%arg0: i32, %arg1: i32) -> (i32, i32) {
    %c0_i32 = arith.constant 0 : i32
    %c0_i32_0 = arith.constant 0 : i32
    return %arg1, %c0_i32 : i32, i32
  }
  func.func @transform_2(%arg0: i32, %arg1: i32) -> (i32, i32) {
    %c0_i32 = arith.constant 0 : i32
    return %arg0, %arg1 : i32, i32
  }
  func.func @transform_3(%arg0: i32, %arg1: i32) -> (i32, i32) {
    %c0_i32 = arith.constant 0 : i32
    return %arg0, %arg1 : i32, i32
  }
  func.func @transform_4(%arg0: i32, %arg1: i32) -> (i32, i32) {
    %c0_i32 = arith.constant 0 : i32
    %c0_i32_0 = arith.constant 0 : i32
    %c0_i32_1 = arith.constant 0 : i32
    return %c0_i32, %c0_i32_0 : i32, i32
  }
  func.func @transform_5(%arg0: i32, %arg1: i32) -> (i32, i32) {
    %c0_i32 = arith.constant 0 : i32
    %c0_i32_0 = arith.constant 0 : i32
    %c0_i32_1 = arith.constant 0 : i32
    return %c0_i32, %c0_i32_0 : i32, i32
  }
  func.func @transform_6(%arg0: i32, %arg1: i32) -> (i32, i32) {
    %c0_i32 = arith.constant 0 : i32
    return %arg0, %arg1 : i32, i32
  }
}

module attributes {stable_mosaic.version = 11 : i64} {
  func.func @_edge_update_kernel(%arg0: i32, %arg1: i32, %arg2: memref<8x96xf32, #tpu.memory_space<vmem>>, %arg3: memref<8x96xf32, #tpu.memory_space<vmem>>, %arg4: memref<8x8x32xf32, #tpu.memory_space<vmem>>, %arg5: memref<8x8xf32, #tpu.memory_space<vmem>>, %arg6: memref<32x96xf32, #tpu.memory_space<vmem>>, %arg7: memref<1x32xf32, #tpu.memory_space<vmem>>, %arg8: memref<8x8x32xf32, #tpu.memory_space<vmem>>) attributes {dimension_semantics = [#tpu.dimension_semantics<parallel>, #tpu.dimension_semantics<parallel>], iteration_bounds = array<i64: 1, 1>, scalar_prefetch = 0 : i64, scratch_operands = 0 : i64, tpu.core_type = #tpu.core_type<tc>, window_params = [{transform_indices = @transform_0, window_bounds = array<i64: 8, 96>}, {transform_indices = @transform_1, window_bounds = array<i64: 8, 96>}, {transform_indices = @transform_2, window_bounds = array<i64: 8, 8, 32>}, {transform_indices = @transform_3, window_bounds = array<i64: 8, 8>}, {pipeline_mode = #tpu.pipeline_mode<synchronous>, transform_indices = @transform_4, window_bounds = array<i64: 32, 96>}, {pipeline_mode = #tpu.pipeline_mode<synchronous>, transform_indices = @transform_5, window_bounds = array<i64: 1, 32>}, {transform_indices = @transform_6, window_bounds = array<i64: 8, 8, 32>}]} {
    %c0 = arith.constant 0 : index
    %c0_0 = arith.constant 0 : index
    %0 = vector.load %arg6[%c0, %c0_0] : memref<32x96xf32, #tpu.memory_space<vmem>>, vector<32x96xf32>
    %c0_1 = arith.constant 0 : index
    %c0_2 = arith.constant 0 : index
    %1 = vector.load %arg7[%c0_1, %c0_2] : memref<1x32xf32, #tpu.memory_space<vmem>>, vector<1x32xf32>
    %2 = vector.shape_cast %1 : vector<1x32xf32> to vector<1x1x32xf32>
    %c0_3 = arith.constant 0 : index
    %c0_4 = arith.constant 0 : index
    %3 = vector.load %arg3[%c0_3, %c0_4] : memref<8x96xf32, #tpu.memory_space<vmem>>, vector<8x96xf32>
    %4 = vector.shape_cast %3 : vector<8x96xf32> to vector<1x8x96xf32>
    %c0_i32 = arith.constant 0 : i32
    %c8_i32 = arith.constant 8 : i32
    %5 = arith.muli %c0_i32, %c8_i32 : i32
    %6 = tpu.assume_multiple %5, 8 : i32
    %7 = arith.index_cast %6 : i32 to index
    %c0_5 = arith.constant 0 : index
    %c0_6 = arith.constant 0 : index
    %8 = vector.load %arg4[%7, %c0_5, %c0_6] : memref<8x8x32xf32, #tpu.memory_space<vmem>>, vector<8x8x32xf32>
    %9 = arith.index_cast %6 : i32 to index
    %c0_7 = arith.constant 0 : index
    %10 = vector.load %arg5[%9, %c0_7] : memref<8x8xf32, #tpu.memory_space<vmem>>, vector<8x8xf32>
    %11 = vector.shape_cast %10 : vector<8x8xf32> to vector<8x8x1xf32>
    %12 = arith.index_cast %6 : i32 to index
    %c0_8 = arith.constant 0 : index
    %13 = vector.load %arg2[%12, %c0_8] : memref<8x96xf32, #tpu.memory_space<vmem>>, vector<8x96xf32>
    %14 = vector.shape_cast %13 : vector<8x96xf32> to vector<8x1x96xf32>
    %15 = vector.broadcast %11 : vector<8x8x1xf32> to vector<8x8x32xf32>
    %16 = arith.mulf %8, %15 : vector<8x8x32xf32>
    %17 = vector.shape_cast %16 : vector<8x8x32xf32> to vector<64x32xf32>
    %cst = arith.constant dense<0.000000e+00> : vector<64x96xf32>
    %18 = tpu.matmul %17, %0, %cst {dimension_numbers = #tpu.dot_dimension_numbers<[1], [0], [0], [1], [0, 0, 1, 1], [], []>} : vector<64x32xf32>, vector<32x96xf32>, vector<64x96xf32> -> vector<64x96xf32>
    %19 = vector.shape_cast %18 : vector<64x96xf32> to vector<8x8x96xf32>
    %20 = vector.extract_strided_slice %19 {offsets = [0, 0, 0], sizes = [8, 8, 64], strides = [1, 1, 1]} : vector<8x8x96xf32> to vector<8x8x64xf32>
    %21 = vector.extract_strided_slice %14 {offsets = [0, 0, 0], sizes = [8, 1, 64], strides = [1, 1, 1]} : vector<8x1x96xf32> to vector<8x1x64xf32>
    %22 = vector.broadcast %21 : vector<8x1x64xf32> to vector<8x8x64xf32>
    %23 = arith.addf %20, %22 : vector<8x8x64xf32>
    %24 = vector.extract_strided_slice %4 {offsets = [0, 0, 0], sizes = [1, 8, 64], strides = [1, 1, 1]} : vector<1x8x96xf32> to vector<1x8x64xf32>
    %25 = vector.broadcast %24 : vector<1x8x64xf32> to vector<8x8x64xf32>
    %26 = arith.addf %23, %25 : vector<8x8x64xf32>
    %27 = arith.negf %26 : vector<8x8x64xf32>
    %28 = math.exp %27 : vector<8x8x64xf32>
    %cst_9 = arith.constant 1.000000e+00 : f32
    %29 = vector.broadcast %cst_9 : f32 to vector<8x8x64xf32>
    %30 = arith.addf %29, %28 : vector<8x8x64xf32>
    %31 = arith.divf %29, %30 : vector<8x8x64xf32>
    %32 = vector.extract_strided_slice %31 {offsets = [0, 0, 0], sizes = [8, 8, 32], strides = [1, 1, 1]} : vector<8x8x64xf32> to vector<8x8x32xf32>
    %33 = vector.extract_strided_slice %31 {offsets = [0, 0, 32], sizes = [8, 8, 32], strides = [1, 1, 1]} : vector<8x8x64xf32> to vector<8x8x32xf32>
    %34 = vector.extract_strided_slice %14 {offsets = [0, 0, 64], sizes = [8, 1, 32], strides = [1, 1, 1]} : vector<8x1x96xf32> to vector<8x1x32xf32>
    %35 = vector.extract_strided_slice %4 {offsets = [0, 0, 64], sizes = [1, 8, 32], strides = [1, 1, 1]} : vector<1x8x96xf32> to vector<1x8x32xf32>
    %36 = vector.broadcast %34 : vector<8x1x32xf32> to vector<8x8x32xf32>
    %37 = vector.broadcast %35 : vector<1x8x32xf32> to vector<8x8x32xf32>
    %38 = arith.addf %36, %37 : vector<8x8x32xf32>
    %39 = vector.extract_strided_slice %19 {offsets = [0, 0, 64], sizes = [8, 8, 32], strides = [1, 1, 1]} : vector<8x8x96xf32> to vector<8x8x32xf32>
    %40 = vector.broadcast %2 : vector<1x1x32xf32> to vector<8x8x32xf32>
    %41 = arith.addf %39, %40 : vector<8x8x32xf32>
    %42 = arith.mulf %32, %41 : vector<8x8x32xf32>
    %43 = arith.addf %38, %42 : vector<8x8x32xf32>
    %44 = math.tanh %43 : vector<8x8x32xf32>
    %45 = arith.subf %16, %44 : vector<8x8x32xf32>
    %46 = arith.mulf %33, %45 : vector<8x8x32xf32>
    %47 = arith.addf %44, %46 : vector<8x8x32xf32>
    %48 = arith.index_cast %6 : i32 to index
    %c0_10 = arith.constant 0 : index
    %c0_11 = arith.constant 0 : index
    %49 = vector.load %arg8[%48, %c0_10, %c0_11] : memref<8x8x32xf32, #tpu.memory_space<vmem>>, vector<8x8x32xf32>
    tpu.vector_store %arg8[%48, %c0_10, %c0_11], %47 {strides = array<i32>} : memref<8x8x32xf32, #tpu.memory_space<vmem>>, vector<8x8x32xf32>,
    %c1_i32 = arith.constant 1 : i32
    return
  }
  func.func @transform_0(%arg0: i32, %arg1: i32) -> (i32, i32) {
    %c0_i32 = arith.constant 0 : i32
    %c0_i32_0 = arith.constant 0 : i32
    return %arg0, %c0_i32 : i32, i32
  }
  func.func @transform_1(%arg0: i32, %arg1: i32) -> (i32, i32) {
    %c0_i32 = arith.constant 0 : i32
    %c0_i32_0 = arith.constant 0 : i32
    return %arg1, %c0_i32 : i32, i32
  }
  func.func @transform_2(%arg0: i32, %arg1: i32) -> (i32, i32, i32) {
    %c0_i32 = arith.constant 0 : i32
    %c0_i32_0 = arith.constant 0 : i32
    return %arg0, %arg1, %c0_i32 : i32, i32, i32
  }
  func.func @transform_3(%arg0: i32, %arg1: i32) -> (i32, i32) {
    %c0_i32 = arith.constant 0 : i32
    return %arg0, %arg1 : i32, i32
  }
  func.func @transform_4(%arg0: i32, %arg1: i32) -> (i32, i32) {
    %c0_i32 = arith.constant 0 : i32
    %c0_i32_0 = arith.constant 0 : i32
    %c0_i32_1 = arith.constant 0 : i32
    return %c0_i32, %c0_i32_0 : i32, i32
  }
  func.func @transform_5(%arg0: i32, %arg1: i32) -> (i32, i32) {
    %c0_i32 = arith.constant 0 : i32
    %c0_i32_0 = arith.constant 0 : i32
    %c0_i32_1 = arith.constant 0 : i32
    return %c0_i32, %c0_i32_0 : i32, i32
  }
  func.func @transform_6(%arg0: i32, %arg1: i32) -> (i32, i32, i32) {
    %c0_i32 = arith.constant 0 : i32
    %c0_i32_0 = arith.constant 0 : i32
    return %arg0, %arg1, %c0_i32 : i32, i32, i32
  }
}

</mosaic_0001>

<llo_original>
// kernel: edge_update_forward.1
$region0: #{edge_update_forward.1}
  #allocation0 [shape = 'u32[]', space=smem, size = 0x4, offset = 0x4, fixed_abs, tag = 'smem constant byte address 0x4 - core index']
  #allocation1 [shape = 'u32[144,128]{1,0:T(1,128)}', space=vmem, size = 0x12000, scoped, tag = 'internal scratch']
  %s0 = inlined_call_operand.vmem [shape: f32[8,96], index: 0, kind: input, shape index: {}]
  %s1 = inlined_call_operand.vmem [shape: f32[8,96], index: 1, kind: input, shape index: {}]
  %s2 = inlined_call_operand.vmem [shape: f32[8,256], index: 2, kind: input, shape index: {}]
  %s3 = inlined_call_operand.vmem [shape: f32[8,8], index: 3, kind: input, shape index: {}]
  %s4 = inlined_call_operand.vmem [shape: f32[32,96], index: 4, kind: input, shape index: {}]
  %s5 = inlined_call_operand.vmem [shape: f32[1,32], index: 5, kind: input, shape index: {}]
  %s6 = inlined_call_operand.vmem [shape: f32[8,256], index: 6, kind: output, shape index: {}]
  %s7 = sld [smem:[#allocation0]]
  $region34: #{edge_update_forward.1} parent=0
    _
  %s9 = ssub.s32 1, %s7
  %s10 = scalar_select 0, %s9, %s7
  // Predicated region
  $region2: #{edge_update_forward.1} parent=0 // pred_check
    _
  $region3: #{edge_update_forward.1} parent=0 // pred_check_branch
    %12 = sbr.rel (0) target = $region5
  $region4: #{edge_update_forward.1} parent=0 // pred_region
    _
  $region5: #{edge_update_forward.1} parent=0 // pred_fallthru
    _
  // Predicated region
  $region6: #{edge_update_forward.1} parent=0 // pred_check
    _
  $region7: #{edge_update_forward.1} parent=0 // pred_check_branch
    %14 = sbr.rel (0) target = $region9
  $region8: #{edge_update_forward.1} parent=0 // pred_region
    _
  $region9: #{edge_update_forward.1} parent=0 // pred_fallthru
    _
  // Predicated region
  $region10: #{edge_update_forward.1} parent=0 // pred_check
    _
  $region11: #{edge_update_forward.1} parent=0 // pred_check_branch
    %16 = sbr.rel (0) target = $region13
  $region12: #{edge_update_forward.1} parent=0 // pred_region
    _
  $region13: #{edge_update_forward.1} parent=0 // pred_fallthru
    _
  // Predicated region
  $region14: #{edge_update_forward.1} parent=0 // pred_check
    _
  $region15: #{edge_update_forward.1} parent=0 // pred_check_branch
    %18 = sbr.rel (0) target = $region17
  $region16: #{edge_update_forward.1} parent=0 // pred_region
    _
  $region17: #{edge_update_forward.1} parent=0 // pred_fallthru
    _
  // Predicated region
  $region18: #{edge_update_forward.1} parent=0 // pred_check
    _
  $region19: #{edge_update_forward.1} parent=0 // pred_check_branch
    %20 = sbr.rel (0) target = $region21
  $region20: #{edge_update_forward.1} parent=0 // pred_region
    _
  $region21: #{edge_update_forward.1} parent=0 // pred_fallthru
    _
  // Predicated region
  $region22: #{edge_update_forward.1} parent=0 // pred_check
    _
  $region23: #{edge_update_forward.1} parent=0 // pred_check_branch
    %22 = sbr.rel (0) target = $region25
  $region24: #{edge_update_forward.1} parent=0 // pred_region
    _
  $region25: #{edge_update_forward.1} parent=0 // pred_fallthru
    _
  %v23 = vld [vmem:[%s4] sm:$0xff]
  %v24 = vld [vmem:[%s4 + $0x8] sm:$0xff]
  %v25 = vld [vmem:[%s4 + $0x10] sm:$0xff]
  %v26 = vld [vmem:[%s4 + $0x18] sm:$0xff]
  %v27 = vld [vmem:[%s5] sm:$0x1]
  %v28 = vld [vmem:[%s1] sm:$0xff]
  %s29 = smul.u32 0, 2
  %s30 = smul.addr %s29, 8
  %s31 = scalar_lea.vmem %s2, %s30
  %v32 = vld [vmem:[%s31] sm:$0xff]
  %v33 = vld [vmem:[%s31 + $0x8] sm:$0xff]
  %35 = vrot.lane.b32.xlu0 %v32, 96
  %v36 = vpop.permute.xlu0 %35
  %38 = vrot.lane.b32.xlu0 %v32, 64
  %v39 = vpop.permute.xlu0 %38
  %41 = vrot.lane.b32.xlu0 %v32, 32
  %v42 = vpop.permute.xlu0 %41
  %45 = vrot.lane.b32.xlu0 %v33, 96
  %v46 = vpop.permute.xlu0 %45
  %48 = vrot.lane.b32.xlu0 %v33, 64
  %v49 = vpop.permute.xlu0 %48
  %51 = vrot.lane.b32.xlu0 %v33, 32
  %v52 = vpop.permute.xlu0 %51
  %v54 = vcombine.low %v32, %v39
  %v55 = vcombine.high %v32, %v39
  %v57 = vunpack.c.l.s4 1983009808
  %v58 = vunpack.c.0.s8 %v57
  %v59 = vlaneseq
  %v60 = vshrl.u32 %v59, 7
  %v61 = vsub.s32 %v58, %v60
  %v62 = vrot.slane %v54, %v61
  %v64 = vunpack.c.l.s4 1983009808
  %v65 = vunpack.c.0.s8 %v64
  %v66 = vlaneseq
  %v67 = vshrl.u32 %v66, 7
  %v68 = vsub.s32 %v65, %v67
  %v69 = vrot.slane %v55, %v68
  %v70 = vcombine.low %v36, %v42
  %v71 = vcombine.high %v36, %v42
  %v73 = vunpack.c.l.s4 1983009808
  %v74 = vunpack.c.0.s8 %v73
  %v75 = vlaneseq
  %v76 = vshrl.u32 %v75, 7
  %v77 = vsub.s32 %v74, %v76
  %v78 = vrot.slane %v70, %v77
  %v80 = vunpack.c.l.s4 1983009808
  %v81 = vunpack.c.0.s8 %v80
  %v82 = vlaneseq
  %v83 = vshrl.u32 %v82, 7
  %v84 = vsub.s32 %v81, %v83
  %v85 = vrot.slane %v71, %v84
  %v86 = vcombine.low %v33, %v49
  %v87 = vcombine.high %v33, %v49
  %v89 = vunpack.c.l.s4 1983009808
  %v90 = vunpack.c.0.s8 %v89
  %v91 = vlaneseq
  %v92 = vshrl.u32 %v91, 7
  %v93 = vsub.s32 %v90, %v92
  %v94 = vrot.slane %v86, %v93
  %v96 = vunpack.c.l.s4 1983009808
  %v97 = vunpack.c.0.s8 %v96
  %v98 = vlaneseq
  %v99 = vshrl.u32 %v98, 7
  %v100 = vsub.s32 %v97, %v99
  %v101 = vrot.slane %v87, %v100
  %v102 = vcombine.low %v46, %v52
  %v103 = vcombine.high %v46, %v52
  %v105 = vunpack.c.l.s4 1983009808
  %v106 = vunpack.c.0.s8 %v105
  %v107 = vlaneseq
  %v108 = vshrl.u32 %v107, 7
  %v109 = vsub.s32 %v106, %v108
  %v110 = vrot.slane %v102, %v109
  %v112 = vunpack.c.l.s4 1983009808
  %v113 = vunpack.c.0.s8 %v112
  %v114 = vlaneseq
  %v115 = vshrl.u32 %v114, 7
  %v116 = vsub.s32 %v113, %v115
  %v117 = vrot.slane %v103, %v116
  %v118 = vcombine.low %v62, %v78
  %v119 = vcombine.high %v62, %v78
  %v121 = vunpack.c.l.s4 1934713408
  %v122 = vunpack.c.0.s8 %v121
  %v123 = vlaneseq
  %v124 = vshrl.u32 %v123, 7
  %v125 = vsub.s32 %v122, %v124
  %v126 = vrot.slane %v118, %v125
  %v128 = vunpack.c.l.s4 1934713408
  %v129 = vunpack.c.0.s8 %v128
  %v130 = vlaneseq
  %v131 = vshrl.u32 %v130, 7
  %v132 = vsub.s32 %v129, %v131
  %v133 = vrot.slane %v119, %v132
  %v134 = vcombine.low %v69, %v85
  %v135 = vcombine.high %v69, %v85
  %v137 = vunpack.c.l.s4 1934713408
  %v138 = vunpack.c.0.s8 %v137
  %v139 = vlaneseq
  %v140 = vshrl.u32 %v139, 7
  %v141 = vsub.s32 %v138, %v140
  %v142 = vrot.slane %v134, %v141
  %v144 = vunpack.c.l.s4 1934713408
  %v145 = vunpack.c.0.s8 %v144
  %v146 = vlaneseq
  %v147 = vshrl.u32 %v146, 7
  %v148 = vsub.s32 %v145, %v147
  %v149 = vrot.slane %v135, %v148
  %v150 = vcombine.low %v94, %v110
  %v151 = vcombine.high %v94, %v110
  %v153 = vunpack.c.l.s4 1934713408
  %v154 = vunpack.c.0.s8 %v153
  %v155 = vlaneseq
  %v156 = vshrl.u32 %v155, 7
  %v157 = vsub.s32 %v154, %v156
  %v158 = vrot.slane %v150, %v157
  %v160 = vunpack.c.l.s4 1934713408
  %v161 = vunpack.c.0.s8 %v160
  %v162 = vlaneseq
  %v163 = vshrl.u32 %v162, 7
  %v164 = vsub.s32 %v161, %v163
  %v165 = vrot.slane %v151, %v164
  %v166 = vcombine.low %v101, %v117
  %v167 = vcombine.high %v101, %v117
  %v169 = vunpack.c.l.s4 1934713408
  %v170 = vunpack.c.0.s8 %v169
  %v171 = vlaneseq
  %v172 = vshrl.u32 %v171, 7
  %v173 = vsub.s32 %v170, %v172
  %v174 = vrot.slane %v166, %v173
  %v176 = vunpack.c.l.s4 1934713408
  %v177 = vunpack.c.0.s8 %v176
  %v178 = vlaneseq
  %v179 = vshrl.u32 %v178, 7
  %v180 = vsub.s32 %v177, %v179
  %v181 = vrot.slane %v167, %v180
  %v182 = vcombine.low %v126, %v158
  %v183 = vcombine.high %v126, %v158
  %v184 = vcombine.low %v133, %v165
  %v185 = vcombine.high %v133, %v165
  %v186 = vcombine.low %v142, %v174
  %v187 = vcombine.high %v142, %v174
  %v188 = vcombine.low %v149, %v181
  %v189 = vcombine.high %v149, %v181
  %v190 = vld [vmem:[%s3] sm:$0xff]
  %v191 = vlaneseq
  %v192 = vshrl.u32 %v191, 7
  %v193 = vsub.s32 0, %v192
  %v194 = vrot.slane %v190, %v193
  %196 = vbcast.lane.b32.xlu0 %v194, 256
  %v197 = vpop.permute.xlu0 %196
  %v198 = vlaneseq
  %v199 = vshrl.u32 %v198, 7
  %v200 = vsub.s32 1, %v199
  %v201 = vrot.slane %v190, %v200
  %203 = vbcast.lane.b32.xlu0 %v201, 256
  %v204 = vpop.permute.xlu0 %203
  %v205 = vlaneseq
  %v206 = vshrl.u32 %v205, 7
  %v207 = vsub.s32 2, %v206
  %v208 = vrot.slane %v190, %v207
  %210 = vbcast.lane.b32.xlu0 %v208, 256
  %v211 = vpop.permute.xlu0 %210
  %v212 = vlaneseq
  %v213 = vshrl.u32 %v212, 7
  %v214 = vsub.s32 3, %v213
  %v215 = vrot.slane %v190, %v214
  %217 = vbcast.lane.b32.xlu0 %v215, 256
  %v218 = vpop.permute.xlu0 %217
  %v219 = vlaneseq
  %v220 = vshrl.u32 %v219, 7
  %v221 = vsub.s32 4, %v220
  %v222 = vrot.slane %v190, %v221
  %224 = vbcast.lane.b32.xlu0 %v222, 256
  %v225 = vpop.permute.xlu0 %224
  %v226 = vlaneseq
  %v227 = vshrl.u32 %v226, 7
  %v228 = vsub.s32 5, %v227
  %v229 = vrot.slane %v190, %v228
  %231 = vbcast.lane.b32.xlu0 %v229, 256
  %v232 = vpop.permute.xlu0 %231
  %v233 = vlaneseq
  %v234 = vshrl.u32 %v233, 7
  %v235 = vsub.s32 6, %v234
  %v236 = vrot.slane %v190, %v235
  %238 = vbcast.lane.b32.xlu0 %v236, 256
  %v239 = vpop.permute.xlu0 %238
  %v240 = vlaneseq
  %v241 = vshrl.u32 %v240, 7
  %v242 = vsub.s32 7, %v241
  %v243 = vrot.slane %v190, %v242
  %245 = vbcast.lane.b32.xlu0 %v243, 256
  %v246 = vpop.permute.xlu0 %245
  %v247 = vld [vmem:[%s0] sm:$0xff]
  %v249 = vcombine.high %v247, %v247
  %v251 = vunpack.c.l.s4 1966171168
  %v252 = vunpack.c.0.s8 %v251
  %v253 = vlaneseq
  %v254 = vshrl.u32 %v253, 7
  %v255 = vsub.s32 %v252, %v254
  %v256 = vrot.slane %v247, %v255
  %v258 = vunpack.c.l.s4 1966171168
  %v259 = vunpack.c.0.s8 %v258
  %v260 = vlaneseq
  %v261 = vshrl.u32 %v260, 7
  %v262 = vsub.s32 %v259, %v261
  %v263 = vrot.slane %v249, %v262
  %v264 = vcombine.high %v256, %v256
  %v265 = vcombine.high %v263, %v263
  %v267 = vunpack.c.l.s4 1966171168
  %v268 = vunpack.c.0.s8 %v267
  %v269 = vlaneseq
  %v270 = vshrl.u32 %v269, 7
  %v271 = vsub.s32 %v268, %v270
  %v272 = vrot.slane %v256, %v271
  %v274 = vunpack.c.l.s4 1966171168
  %v275 = vunpack.c.0.s8 %v274
  %v276 = vlaneseq
  %v277 = vshrl.u32 %v276, 7
  %v278 = vsub.s32 %v275, %v277
  %v279 = vrot.slane %v263, %v278
  %v281 = vunpack.c.l.s4 1966171168
  %v282 = vunpack.c.0.s8 %v281
  %v283 = vlaneseq
  %v284 = vshrl.u32 %v283, 7
  %v285 = vsub.s32 %v282, %v284
  %v286 = vrot.slane %v264, %v285
  %v288 = vunpack.c.l.s4 1966171168
  %v289 = vunpack.c.0.s8 %v288
  %v290 = vlaneseq
  %v291 = vshrl.u32 %v290, 7
  %v292 = vsub.s32 %v289, %v291
  %v293 = vrot.slane %v265, %v292
  %v294 = vcombine.high %v272, %v272
  %v295 = vcombine.high %v279, %v279
  %v296 = vcombine.high %v286, %v286
  %v297 = vcombine.high %v293, %v293
  %v298 = vmul.f32 %v182, %v197
  %v299 = vmul.f32 %v183, %v204
  %v300 = vmul.f32 %v184, %v211
  %v301 = vmul.f32 %v185, %v218
  %v302 = vmul.f32 %v186, %v225
  %v303 = vmul.f32 %v187, %v232
  %v304 = vmul.f32 %v188, %v239
  %v305 = vmul.f32 %v189, %v246
  %vm306 = vcmask 261120
  %v308 = vsel %vm306, %v298, 0
  %v311 = vsel %vm306, %v299, 0
  %v314 = vsel %vm306, %v300, 0
  %v317 = vsel %vm306, %v301, 0
  %v320 = vsel %vm306, %v302, 0
  %v323 = vsel %vm306, %v303, 0
  %v326 = vsel %vm306, %v304, 0
  %v329 = vsel %vm306, %v305, 0
  %331 = vmatprep.subr.mxu0 0.0
  %332 = vmatpush1.msra.mxu0 %v23
  %333 = vmatprep.subr.mxu0 0.0
  %334 = vmatpush1.msra.mxu0 %v24
  %335 = vmatprep.subr.mxu0 0.0
  %336 = vmatpush1.msra.mxu0 %v25
  %337 = vmatprep.subr.mxu0 0.0
  %338 = vmatpush1.msra.mxu0 %v26
  %339 = vmatprep.subr.mxu0 0.0
  %340 = vmatpush1.msra.mxu0 0.0
  %341 = vmatprep.subr.mxu0 0.0
  %342 = vmatpush1.msra.mxu0 0.0
  %343 = vmatprep.subr.mxu0 0.0
  %344 = vmatpush1.msra.mxu0 0.0
  %345 = vmatprep.subr.mxu0 0.0
  %346 = vmatpush1.msra.mxu0 0.0
  %347 = vmatprep.subr.mxu0 0.0
  %348 = vmatpush1.msra.mxu0 0.0
  %349 = vmatprep.subr.mxu0 0.0
  %350 = vmatpush1.msra.mxu0 0.0
  %351 = vmatprep.subr.mxu0 0.0
  %352 = vmatpush1.msra.mxu0 0.0
  %353 = vmatprep.subr.mxu0 0.0
  %354 = vmatpush1.msra.mxu0 0.0
  %355 = vmatprep.subr.mxu0 0.0
  %356 = vmatpush1.msra.mxu0 0.0
  %357 = vmatprep.subr.mxu0 0.0
  %358 = vmatpush1.msra.mxu0 0.0
  %359 = vmatprep.subr.mxu0 0.0
  %360 = vmatpush1.msra.mxu0 0.0
  %361 = vmatprep.subr.mxu0 0.0
  %362 = vmatpush1.msra.mxu0 0.0
  %363 = vmatprep.subr.mxu0 0.0
  %364 = vmatpush1.msra.mxu0 0.0
  %365 = vmatprep.subr.mxu0 0.0
  %366 = vmatpush1.msra.mxu0 0.0
  %367 = vmatprep.subr.mxu0 0.0
  %368 = vmatpush1.msra.mxu0 0.0
  %369 = vmatprep.subr.mxu0 0.0
  %370 = vmatpush1.msra.mxu0 0.0
  %371 = vmatprep.subr.mxu0 0.0
  %372 = vmatpush1.msra.mxu0 0.0
  %373 = vmatprep.subr.mxu0 0.0
  %374 = vmatpush1.msra.mxu0 0.0
  %375 = vmatprep.subr.mxu0 0.0
  %376 = vmatpush1.msra.mxu0 0.0
  %377 = vmatprep.subr.mxu0 0.0
  %378 = vmatpush1.msra.mxu0 0.0
  %379 = vmatprep.subr.mxu0 0.0
  %380 = vmatpush1.msra.mxu0 0.0
  %381 = vmatprep.subr.mxu0 0.0
  %382 = vmatpush1.msra.mxu0 0.0
  %383 = vmatprep.subr.mxu0 0.0
  %384 = vmatpush1.msra.mxu0 0.0
  %385 = vmatprep.subr.mxu0 0.0
  %386 = vmatpush1.msra.mxu0 0.0
  %387 = vmatprep.subr.mxu0 0.0
  %388 = vmatpush1.msra.mxu0 0.0
  %389 = vmatprep.subr.mxu0 0.0
  %390 = vmatpush1.msra.mxu0 0.0
  %391 = vmatprep.subr.mxu0 0.0
  %392 = vmatpush1.msra.mxu0 0.0
  %393 = vmatprep.subr.mxu0 0.0
  %394 = vmatpush1.msra.mxu0 0.0
  %395 = vmatprep.mubr.f32.mxu0 0.0
  %396 = vmatmul.mubr.f32.gmra.mrb[0].mxu0 %v308
  %v397 = vpop.f32.mrb[0].mxu0
  %v398 = vadd.f32 0.0, %v397
  %v399 = vpop.f32.mrb[0].mxu0
  %400 = vmatprep.mubr.f32.mxu0 0.0
  %401 = vmatmul.mubr.f32.gmra.mrb[0].mxu0 %v311
  %v402 = vpop.f32.mrb[0].mxu0
  %v403 = vadd.f32 0.0, %v402
  %v404 = vpop.f32.mrb[0].mxu0
  %405 = vmatprep.mubr.f32.mxu0 0.0
  %406 = vmatmul.mubr.f32.gmra.mrb[0].mxu0 %v314
  %v407 = vpop.f32.mrb[0].mxu0
  %v408 = vadd.f32 0.0, %v407
  %v409 = vpop.f32.mrb[0].mxu0
  %410 = vmatprep.mubr.f32.mxu0 0.0
  %411 = vmatmul.mubr.f32.gmra.mrb[0].mxu0 %v317
  %v412 = vpop.f32.mrb[0].mxu0
  %v413 = vadd.f32 0.0, %v412
  %v414 = vpop.f32.mrb[0].mxu0
  %415 = vmatprep.mubr.f32.mxu0 0.0
  %416 = vmatmul.mubr.f32.gmra.mrb[0].mxu0 %v320
  %v417 = vpop.f32.mrb[0].mxu0
  %v418 = vadd.f32 0.0, %v417
  %v419 = vpop.f32.mrb[0].mxu0
  %420 = vmatprep.mubr.f32.mxu0 0.0
  %421 = vmatmul.mubr.f32.gmra.mrb[0].mxu0 %v323
  %v422 = vpop.f32.mrb[0].mxu0
  %v423 = vadd.f32 0.0, %v422
  %v424 = vpop.f32.mrb[0].mxu0
  %425 = vmatprep.mubr.f32.mxu0 0.0
  %426 = vmatmul.mubr.f32.gmra.mrb[0].mxu0 %v326
  %v427 = vpop.f32.mrb[0].mxu0
  %v428 = vadd.f32 0.0, %v427
  %v429 = vpop.f32.mrb[0].mxu0
  %430 = vmatprep.mubr.f32.mxu0 0.0
  %431 = vmatmul.mubr.f32.gmra.mrb[0].mxu0 %v329
  %v432 = vpop.f32.mrb[0].mxu0
  %v433 = vadd.f32 0.0, %v432
  %v434 = vpop.f32.mrb[0].mxu0
  %435 = vdwg.mxu0
  %v436 = vlaneseq
  %v437 = vshrl.u32 %v436, 7
  %v438 = vsub.s32 0, %v437
  %v439 = vrot.slane %v272, %v438
  %v440 = vlaneseq
  %v441 = vshrl.u32 %v440, 7
  %v442 = vsub.s32 0, %v441
  %v443 = vrot.slane %v286, %v442
  %v444 = vlaneseq
  %v445 = vshrl.u32 %v444, 7
  %v446 = vsub.s32 0, %v445
  %v447 = vrot.slane %v294, %v446
  %v448 = vlaneseq
  %v449 = vshrl.u32 %v448, 7
  %v450 = vsub.s32 0, %v449
  %v451 = vrot.slane %v296, %v450
  %v452 = vlaneseq
  %v453 = vshrl.u32 %v452, 7
  %v454 = vsub.s32 0, %v453
  %v455 = vrot.slane %v279, %v454
  %v456 = vlaneseq
  %v457 = vshrl.u32 %v456, 7
  %v458 = vsub.s32 0, %v457
  %v459 = vrot.slane %v293, %v458
  %v460 = vlaneseq
  %v461 = vshrl.u32 %v460, 7
  %v462 = vsub.s32 0, %v461
  %v463 = vrot.slane %v295, %v462
  %v464 = vlaneseq
  %v465 = vshrl.u32 %v464, 7
  %v466 = vsub.s32 0, %v465
  %v467 = vrot.slane %v297, %v466
  %v476 = vadd.f32 %v398, %v439
  %v477 = vadd.f32 %v403, %v443
  %v478 = vadd.f32 %v408, %v447
  %v479 = vadd.f32 %v413, %v451
  %v480 = vadd.f32 %v418, %v455
  %v481 = vadd.f32 %v423, %v459
  %v482 = vadd.f32 %v428, %v463
  %v483 = vadd.f32 %v433, %v467
  %v484 = vadd.f32 %v476, %v28
  %v485 = vadd.f32 %v477, %v28
  %v486 = vadd.f32 %v478, %v28
  %v487 = vadd.f32 %v479, %v28
  %v488 = vadd.f32 %v480, %v28
  %v489 = vadd.f32 %v481, %v28
  %v490 = vadd.f32 %v482, %v28
  %v491 = vadd.f32 %v483, %v28
  %v492 = vxor.u32 %v484, 2147483648
  %v493 = vxor.u32 %v485, 2147483648
  %v494 = vxor.u32 %v486, 2147483648
  %v495 = vxor.u32 %v487, 2147483648
  %v496 = vxor.u32 %v488, 2147483648
  %v497 = vxor.u32 %v489, 2147483648
  %v498 = vxor.u32 %v490, 2147483648
  %v499 = vxor.u32 %v491, 2147483648
  %v500 = vmul.f32 %v492, 1.442695
  %v501 = vpow.pop %v500
  %v502 = vmul.f32 %v493, 1.442695
  %v503 = vpow.pop %v502
  %v504 = vmul.f32 %v494, 1.442695
  %v505 = vpow.pop %v504
  %v506 = vmul.f32 %v495, 1.442695
  %v507 = vpow.pop %v506
  %v508 = vmul.f32 %v496, 1.442695
  %v509 = vpow.pop %v508
  %v510 = vmul.f32 %v497, 1.442695
  %v511 = vpow.pop %v510
  %v512 = vmul.f32 %v498, 1.442695
  %v513 = vpow.pop %v512
  %v514 = vmul.f32 %v499, 1.442695
  %v515 = vpow.pop %v514
  %v516 = vadd.f32 %v501, 1.0
  %v517 = vadd.f32 %v503, 1.0
  %v518 = vadd.f32 %v505, 1.0
  %v519 = vadd.f32 %v507, 1.0
  %v520 = vadd.f32 %v509, 1.0
  %v521 = vadd.f32 %v511, 1.0
  %v522 = vadd.f32 %v513, 1.0
  %v523 = vadd.f32 %v515, 1.0
  %v524 = vrcp.pop %v516
  %v525 = vmul.f32 1.0, %v524
  %v526 = vrcp.pop %v517
  %v527 = vmul.f32 1.0, %v526
  %v528 = vrcp.pop %v518
  %v529 = vmul.f32 1.0, %v528
  %v530 = vrcp.pop %v519
  %v531 = vmul.f32 1.0, %v530
  %v532 = vrcp.pop %v520
  %v533 = vmul.f32 1.0, %v532
  %v534 = vrcp.pop %v521
  %v535 = vmul.f32 1.0, %v534
  %v536 = vrcp.pop %v522
  %v537 = vmul.f32 1.0, %v536
  %v538 = vrcp.pop %v523
  %v539 = vmul.f32 1.0, %v538
  %v540 = vadd.f32 %v439, %v28
  %v541 = vadd.f32 %v443, %v28
  %v542 = vadd.f32 %v447, %v28
  %v543 = vadd.f32 %v451, %v28
  %v544 = vadd.f32 %v455, %v28
  %v545 = vadd.f32 %v459, %v28
  %v546 = vadd.f32 %v463, %v28
  %v547 = vadd.f32 %v467, %v28
  %v549 = vlaneseq
  %v550 = vshrl.u32 %v549, 7
  %v551 = vsub.s32 0, %v550
  %v552 = vrot.slane %v27, %v551
  %553 = vrot.lane.b32.xlu0 %v552, 64
  %v554 = vpop.permute.xlu0 %553
  %v556 = vadd.f32 %v398, %v554
  %v557 = vadd.f32 %v403, %v554
  %v558 = vadd.f32 %v408, %v554
  %v559 = vadd.f32 %v413, %v554
  %v560 = vadd.f32 %v418, %v554
  %v561 = vadd.f32 %v423, %v554
  %v562 = vadd.f32 %v428, %v554
  %v563 = vadd.f32 %v433, %v554
  %572 = vrot.lane.b32.xlu0 %v556, 64
  %v573 = vpop.permute.xlu0 %572
  %574 = vrot.lane.b32.xlu0 %v557, 64
  %v575 = vpop.permute.xlu0 %574
  %576 = vrot.lane.b32.xlu0 %v558, 64
  %v577 = vpop.permute.xlu0 %576
  %578 = vrot.lane.b32.xlu0 %v559, 64
  %v579 = vpop.permute.xlu0 %578
  %580 = vrot.lane.b32.xlu0 %v560, 64
  %v581 = vpop.permute.xlu0 %580
  %582 = vrot.lane.b32.xlu0 %v561, 64
  %v583 = vpop.permute.xlu0 %582
  %584 = vrot.lane.b32.xlu0 %v562, 64
  %v585 = vpop.permute.xlu0 %584
  %586 = vrot.lane.b32.xlu0 %v563, 64
  %v587 = vpop.permute.xlu0 %586
  %v596 = vmul.f32 %v525, %v573
  %v597 = vmul.f32 %v527, %v575
  %v598 = vmul.f32 %v529, %v577
  %v599 = vmul.f32 %v531, %v579
  %v600 = vmul.f32 %v533, %v581
  %v601 = vmul.f32 %v535, %v583
  %v602 = vmul.f32 %v537, %v585
  %v603 = vmul.f32 %v539, %v587
  %612 = vrot.lane.b32.xlu0 %v596, 64
  %v613 = vpop.permute.xlu0 %612
  %614 = vrot.lane.b32.xlu0 %v597, 64
  %v615 = vpop.permute.xlu0 %614
  %616 = vrot.lane.b32.xlu0 %v598, 64
  %v617 = vpop.permute.xlu0 %616
  %618 = vrot.lane.b32.xlu0 %v599, 64
  %v619 = vpop.permute.xlu0 %618
  %620 = vrot.lane.b32.xlu0 %v600, 64
  %v621 = vpop.permute.xlu0 %620
  %622 = vrot.lane.b32.xlu0 %v601, 64
  %v623 = vpop.permute.xlu0 %622
  %624 = vrot.lane.b32.xlu0 %v602, 64
  %v625 = vpop.permute.xlu0 %624
  %626 = vrot.lane.b32.xlu0 %v603, 64
  %v627 = vpop.permute.xlu0 %626
  %v636 = vadd.f32 %v540, %v613
  %v637 = vadd.f32 %v541, %v615
  %v638 = vadd.f32 %v542, %v617
  %v639 = vadd.f32 %v543, %v619
  %v640 = vadd.f32 %v544, %v621
  %v641 = vadd.f32 %v545, %v623
  %v642 = vadd.f32 %v546, %v625
  %v643 = vadd.f32 %v547, %v627
  %v644 = vtanh.pop %v636
  %v645 = vtanh.pop %v637
  %v646 = vtanh.pop %v638
  %v647 = vtanh.pop %v639
  %v648 = vtanh.pop %v640
  %v649 = vtanh.pop %v641
  %v650 = vtanh.pop %v642
  %v651 = vtanh.pop %v643
  %660 = vrot.lane.b32.xlu0 %v644, 64
  %v661 = vpop.permute.xlu0 %660
  %662 = vrot.lane.b32.xlu0 %v645, 64
  %v663 = vpop.permute.xlu0 %662
  %664 = vrot.lane.b32.xlu0 %v646, 64
  %v665 = vpop.permute.xlu0 %664
  %666 = vrot.lane.b32.xlu0 %v647, 64
  %v667 = vpop.permute.xlu0 %666
  %668 = vrot.lane.b32.xlu0 %v648, 64
  %v669 = vpop.permute.xlu0 %668
  %670 = vrot.lane.b32.xlu0 %v649, 64
  %v671 = vpop.permute.xlu0 %670
  %672 = vrot.lane.b32.xlu0 %v650, 64
  %v673 = vpop.permute.xlu0 %672
  %674 = vrot.lane.b32.xlu0 %v651, 64
  %v675 = vpop.permute.xlu0 %674
  %v684 = vsub.f32 %v298, %v661
  %v685 = vsub.f32 %v299, %v663
  %v686 = vsub.f32 %v300, %v665
  %v687 = vsub.f32 %v301, %v667
  %v688 = vsub.f32 %v302, %v669
  %v689 = vsub.f32 %v303, %v671
  %v690 = vsub.f32 %v304, %v673
  %v691 = vsub.f32 %v305, %v675
  %700 = vrot.lane.b32.xlu0 %v684, 32
  %v701 = vpop.permute.xlu0 %700
  %702 = vrot.lane.b32.xlu0 %v685, 32
  %v703 = vpop.permute.xlu0 %702
  %704 = vrot.lane.b32.xlu0 %v686, 32
  %v705 = vpop.permute.xlu0 %704
  %706 = vrot.lane.b32.xlu0 %v687, 32
  %v707 = vpop.permute.xlu0 %706
  %708 = vrot.lane.b32.xlu0 %v688, 32
  %v709 = vpop.permute.xlu0 %708
  %710 = vrot.lane.b32.xlu0 %v689, 32
  %v711 = vpop.permute.xlu0 %710
  %712 = vrot.lane.b32.xlu0 %v690, 32
  %v713 = vpop.permute.xlu0 %712
  %714 = vrot.lane.b32.xlu0 %v691, 32
  %v715 = vpop.permute.xlu0 %714
  %v724 = vmul.f32 %v525, %v701
  %v725 = vmul.f32 %v527, %v703
  %v726 = vmul.f32 %v529, %v705
  %v727 = vmul.f32 %v531, %v707
  %v728 = vmul.f32 %v533, %v709
  %v729 = vmul.f32 %v535, %v711
  %v730 = vmul.f32 %v537, %v713
  %v731 = vmul.f32 %v539, %v715
  %740 = vrot.lane.b32.xlu0 %v724, 32
  %v741 = vpop.permute.xlu0 %740
  %742 = vrot.lane.b32.xlu0 %v725, 32
  %v743 = vpop.permute.xlu0 %742
  %744 = vrot.lane.b32.xlu0 %v726, 32
  %v745 = vpop.permute.xlu0 %744
  %746 = vrot.lane.b32.xlu0 %v727, 32
  %v747 = vpop.permute.xlu0 %746
  %748 = vrot.lane.b32.xlu0 %v728, 32
  %v749 = vpop.permute.xlu0 %748
  %750 = vrot.lane.b32.xlu0 %v729, 32
  %v751 = vpop.permute.xlu0 %750
  %752 = vrot.lane.b32.xlu0 %v730, 32
  %v753 = vpop.permute.xlu0 %752
  %754 = vrot.lane.b32.xlu0 %v731, 32
  %v755 = vpop.permute.xlu0 %754
  %v764 = vadd.f32 %v644, %v741
  %v765 = vadd.f32 %v645, %v743
  %v766 = vadd.f32 %v646, %v745
  %v767 = vadd.f32 %v647, %v747
  %v768 = vadd.f32 %v648, %v749
  %v769 = vadd.f32 %v649, %v751
  %v770 = vadd.f32 %v650, %v753
  %v771 = vadd.f32 %v651, %v755
  %780 = vrot.lane.b32.xlu0 %v764, 64
  %v781 = vpop.permute.xlu0 %780
  %782 = vrot.lane.b32.xlu0 %v765, 64
  %v783 = vpop.permute.xlu0 %782
  %784 = vrot.lane.b32.xlu0 %v766, 64
  %v785 = vpop.permute.xlu0 %784
  %786 = vrot.lane.b32.xlu0 %v767, 64
  %v787 = vpop.permute.xlu0 %786
  %788 = vrot.lane.b32.xlu0 %v768, 64
  %v789 = vpop.permute.xlu0 %788
  %790 = vrot.lane.b32.xlu0 %v769, 64
  %v791 = vpop.permute.xlu0 %790
  %792 = vrot.lane.b32.xlu0 %v770, 64
  %v793 = vpop.permute.xlu0 %792
  %794 = vrot.lane.b32.xlu0 %v771, 64
  %v795 = vpop.permute.xlu0 %794
  %v804 = vcombine.low %v781, %v785
  %v805 = vcombine.high %v781, %v785
  %v807 = vunpack.c.l.s4 1983009808
  %v808 = vunpack.c.0.s8 %v807
  %v809 = vlaneseq
  %v810 = vshrl.u32 %v809, 7
  %v811 = vsub.s32 %v808, %v810
  %v812 = vrot.slane %v804, %v811
  %v814 = vunpack.c.l.s4 1983009808
  %v815 = vunpack.c.0.s8 %v814
  %v816 = vlaneseq
  %v817 = vshrl.u32 %v816, 7
  %v818 = vsub.s32 %v815, %v817
  %v819 = vrot.slane %v805, %v818
  %v820 = vcombine.low %v783, %v787
  %v821 = vcombine.high %v783, %v787
  %v823 = vunpack.c.l.s4 1983009808
  %v824 = vunpack.c.0.s8 %v823
  %v825 = vlaneseq
  %v826 = vshrl.u32 %v825, 7
  %v827 = vsub.s32 %v824, %v826
  %v828 = vrot.slane %v820, %v827
  %v830 = vunpack.c.l.s4 1983009808
  %v831 = vunpack.c.0.s8 %v830
  %v832 = vlaneseq
  %v833 = vshrl.u32 %v832, 7
  %v834 = vsub.s32 %v831, %v833
  %v835 = vrot.slane %v821, %v834
  %v836 = vcombine.low %v789, %v793
  %v837 = vcombine.high %v789, %v793
  %v839 = vunpack.c.l.s4 1983009808
  %v840 = vunpack.c.0.s8 %v839
  %v841 = vlaneseq
  %v842 = vshrl.u32 %v841, 7
  %v843 = vsub.s32 %v840, %v842
  %v844 = vrot.slane %v836, %v843
  %v846 = vunpack.c.l.s4 1983009808
  %v847 = vunpack.c.0.s8 %v846
  %v848 = vlaneseq
  %v849 = vshrl.u32 %v848, 7
  %v850 = vsub.s32 %v847, %v849
  %v851 = vrot.slane %v837, %v850
  %v852 = vcombine.low %v791, %v795
  %v853 = vcombine.high %v791, %v795
  %v855 = vunpack.c.l.s4 1983009808
  %v856 = vunpack.c.0.s8 %v855
  %v857 = vlaneseq
  %v858 = vshrl.u32 %v857, 7
  %v859 = vsub.s32 %v856, %v858
  %v860 = vrot.slane %v852, %v859
  %v862 = vunpack.c.l.s4 1983009808
  %v863 = vunpack.c.0.s8 %v862
  %v864 = vlaneseq
  %v865 = vshrl.u32 %v864, 7
  %v866 = vsub.s32 %v863, %v865
  %v867 = vrot.slane %v853, %v866
  %v868 = vcombine.low %v812, %v828
  %v869 = vcombine.high %v812, %v828
  %v871 = vunpack.c.l.s4 1934713408
  %v872 = vunpack.c.0.s8 %v871
  %v873 = vlaneseq
  %v874 = vshrl.u32 %v873, 7
  %v875 = vsub.s32 %v872, %v874
  %v876 = vrot.slane %v868, %v875
  %v878 = vunpack.c.l.s4 1934713408
  %v879 = vunpack.c.0.s8 %v878
  %v880 = vlaneseq
  %v881 = vshrl.u32 %v880, 7
  %v882 = vsub.s32 %v879, %v881
  %v883 = vrot.slane %v869, %v882
  %v884 = vcombine.low %v819, %v835
  %v885 = vcombine.high %v819, %v835
  %v887 = vunpack.c.l.s4 1934713408
  %v888 = vunpack.c.0.s8 %v887
  %v889 = vlaneseq
  %v890 = vshrl.u32 %v889, 7
  %v891 = vsub.s32 %v888, %v890
  %v892 = vrot.slane %v884, %v891
  %v894 = vunpack.c.l.s4 1934713408
  %v895 = vunpack.c.0.s8 %v894
  %v896 = vlaneseq
  %v897 = vshrl.u32 %v896, 7
  %v898 = vsub.s32 %v895, %v897
  %v899 = vrot.slane %v885, %v898
  %v900 = vcombine.low %v844, %v860
  %v901 = vcombine.high %v844, %v860
  %v903 = vunpack.c.l.s4 1934713408
  %v904 = vunpack.c.0.s8 %v903
  %v905 = vlaneseq
  %v906 = vshrl.u32 %v905, 7
  %v907 = vsub.s32 %v904, %v906
  %v908 = vrot.slane %v900, %v907
  %v910 = vunpack.c.l.s4 1934713408
  %v911 = vunpack.c.0.s8 %v910
  %v912 = vlaneseq
  %v913 = vshrl.u32 %v912, 7
  %v914 = vsub.s32 %v911, %v913
  %v915 = vrot.slane %v901, %v914
  %v916 = vcombine.low %v851, %v867
  %v917 = vcombine.high %v851, %v867
  %v919 = vunpack.c.l.s4 1934713408
  %v920 = vunpack.c.0.s8 %v919
  %v921 = vlaneseq
  %v922 = vshrl.u32 %v921, 7
  %v923 = vsub.s32 %v920, %v922
  %v924 = vrot.slane %v916, %v923
  %v926 = vunpack.c.l.s4 1934713408
  %v927 = vunpack.c.0.s8 %v926
  %v928 = vlaneseq
  %v929 = vshrl.u32 %v928, 7
  %v930 = vsub.s32 %v927, %v929
  %v931 = vrot.slane %v917, %v930
  %v932 = vcombine.low %v876, %v908
  %v933 = vcombine.high %v876, %v908
  %v934 = vcombine.low %v883, %v915
  %v935 = vcombine.high %v883, %v915
  %v936 = vcombine.low %v892, %v924
  %v937 = vcombine.high %v892, %v924
  %v938 = vcombine.low %v899, %v931
  %v939 = vcombine.high %v899, %v931
  %941 = vrot.lane.b32.xlu0 %v933, 32
  %v942 = vpop.permute.xlu0 %941
  %945 = vrot.lane.b32.xlu0 %v934, 64
  %v946 = vpop.permute.xlu0 %945
  %949 = vrot.lane.b32.xlu0 %v935, 96
  %v950 = vpop.permute.xlu0 %949
  %953 = vrot.lane.b32.xlu0 %v937, 32
  %v954 = vpop.permute.xlu0 %953
  %957 = vrot.lane.b32.xlu0 %v938, 64
  %v958 = vpop.permute.xlu0 %957
  %961 = vrot.lane.b32.xlu0 %v939, 96
  %v962 = vpop.permute.xlu0 %961
  %v964 = vsel %vm306, %v932, %v942
  %vm965 = vcmask 523264
  %v966 = vsel %vm965, %v964, %v946
  %vm967 = vcmask 785408
  %v968 = vsel %vm967, %v966, %v950
  %v969 = vsel %vm306, %v936, %v954
  %v970 = vsel %vm965, %v969, %v958
  %v971 = vsel %vm967, %v970, %v962
  %s972 = smul.addr %s29, 8
  %s973 = scalar_lea.vmem %s6, %s972
  %974 = vst [vmem:[%s973] sm:$0xff] %v968
  %975 = vst [vmem:[%s973 + $0x8] sm:$0xff] %v971
  // Predicated region
  $region26: #{edge_update_forward.1} parent=0 // pred_check
    _
  $region27: #{edge_update_forward.1} parent=0 // pred_check_branch
    %977 = sbr.rel (0) target = $region29
  $region28: #{edge_update_forward.1} parent=0 // pred_region
    _
  $region29: #{edge_update_forward.1} parent=0 // pred_fallthru
    _
  // Predicated region
  $region30: #{edge_update_forward.1} parent=0 // pred_check
    _
  $region31: #{edge_update_forward.1} parent=0 // pred_check_branch
    %979 = sbr.rel (0) target = $region33
  $region32: #{edge_update_forward.1} parent=0 // pred_region
    _
  $region33: #{edge_update_forward.1} parent=0 // pred_fallthru
    _

// kernel: edge_update_forward.1
$region0: #{edge_update_forward.1}
  #allocation0 [shape = 'u32[]', space=smem, size = 0x4, offset = 0x4, fixed_abs, tag = 'smem constant byte address 0x4 - core index']
  #allocation1 [shape = 'u32[144,128]{1,0:T(1,128)}', space=vmem, size = 0x12000, scoped, tag = 'internal scratch']
  %s0 = inlined_call_operand.vmem [shape: f32[8,96], index: 0, kind: input, shape index: {}]
  %s1 = inlined_call_operand.vmem [shape: f32[8,96], index: 1, kind: input, shape index: {}]
  %s2 = inlined_call_operand.vmem [shape: f32[8,8,32], index: 2, kind: input, shape index: {}]
  %s3 = inlined_call_operand.hbm [shape: f32[8,8], index: 3, kind: input, shape index: {}]
  %s4 = inlined_call_operand.hbm [shape: f32[32,96], index: 4, kind: input, shape index: {}]
  %s5 = inlined_call_operand.vmem [shape: f32[1,32], index: 5, kind: input, shape index: {}]
  %s6 = inlined_call_operand.hbm [shape: f32[8,8,32], index: 6, kind: output, shape index: {}]
  %s7 = sld [smem:[#allocation0]]
  $region42: #{edge_update_forward.1} parent=0
    _
  %s9 = ssub.s32 1, %s7
  %s10 = scalar_select 0, %s9, %s7
  $region1: #{edge_update_forward.1} parent=0
    #allocation2 [shape = 'u8[4096]{0}', space=vmem, size = 0x1000, scoped, tag = 'input window, operand 3, single buffered']
    #allocation3 [shape = 's32[1]{0}', space=sflag, size = 0x4, scoped, tag = 'scoped memory for edge_update_forward.1']
    #allocation4 [shape = 's32[1]{0}', space=sflag, size = 0x4, scoped, tag = 'scoped memory for edge_update_forward.1']
    #allocation5 [shape = 'u8[16384]{0}', space=vmem, size = 0x4000, scoped, tag = 'input window, operand 4, single buffered']
    #allocation6 [shape = 's32[1]{0}', space=sflag, size = 0x4, scoped, tag = 'scoped memory for edge_update_forward.1']
    #allocation7 [shape = 'u8[32768]{0}', space=vmem, size = 0x8000, scoped, tag = 'output window, operand 0, single buffered']
    %11 = vsyncpa [#allocation3], 0
    %12 = vsyncpa [#allocation6], 0
    %13 = vsyncpa [#allocation4], 0
    // Predicated region
    $region2: #{edge_update_forward.1} parent=1 // pred_check
      _
    $region3: #{edge_update_forward.1} parent=1 // pred_check_branch
      %15 = sbr.rel (0) target = $region5
    $region4: #{edge_update_forward.1} parent=1 // pred_region
      _
    $region5: #{edge_update_forward.1} parent=1 // pred_fallthru
      _
    // Predicated region
    $region6: #{edge_update_forward.1} parent=1 // pred_check
      _
    $region7: #{edge_update_forward.1} parent=1 // pred_check_branch
      %17 = sbr.rel (0) target = $region9
    $region8: #{edge_update_forward.1} parent=1 // pred_region
      _
    $region9: #{edge_update_forward.1} parent=1 // pred_fallthru
      _
    // Predicated region
    $region10: #{edge_update_forward.1} parent=1 // pred_check
      _
    $region11: #{edge_update_forward.1} parent=1 // pred_check_branch
      %19 = sbr.rel (0) target = $region13
    $region12: #{edge_update_forward.1} parent=1 // pred_region
      _
    $region13: #{edge_update_forward.1} parent=1 // pred_fallthru
      _
    // Predicated region
    $region14: #{edge_update_forward.1} parent=1 // pred_check
      _
    $region15: #{edge_update_forward.1} parent=1 // pred_check_branch
      %21 = sbr.rel (0) target = $region17
    $region16: #{edge_update_forward.1} parent=1 // pred_region
      %s23 = ssub.s32 128, 128
      %24 = vsyncadd [#allocation3], %s23
      %s26 = sshll.u32 [#allocation2], 4
      %s27 = int_to_ptr.vmem [resolvable:$true] %s26
      %29 = dma.hbm_to_vmem [thread:$0]  %s3, 128, %s27, [#allocation3]
    $region17: #{edge_update_forward.1} parent=1 // pred_fallthru
      _
    // Predicated region
    $region18: #{edge_update_forward.1} parent=1 // pred_check
      _
    $region19: #{edge_update_forward.1} parent=1 // pred_check_branch
      %31 = sbr.rel (0) target = $region21
    $region20: #{edge_update_forward.1} parent=1 // pred_region
      %s33 = ssub.s32 512, 512
      %34 = vsyncadd [#allocation6], %s33
      %s35 = sshll.u32 [#allocation5], 4
      %s36 = int_to_ptr.vmem [resolvable:$true] %s35
      %41 = dma.hbm_to_vmem [thread:$0]  %s4, 512, %s36, [#allocation6], 128, 128, 8
    $region21: #{edge_update_forward.1} parent=1 // pred_fallthru
      _
    // Predicated region
    $region22: #{edge_update_forward.1} parent=1 // pred_check
      _
    $region23: #{edge_update_forward.1} parent=1 // pred_check_branch
      %43 = sbr.rel (0) target = $region25
    $region24: #{edge_update_forward.1} parent=1 // pred_region
      _
    $region25: #{edge_update_forward.1} parent=1 // pred_fallthru
      _
    // Predicated region
    $region26: #{edge_update_forward.1} parent=1 // pred_check
      _
    $region27: #{edge_update_forward.1} parent=1 // pred_check_branch
      %45 = sbr.rel (0) target = $region29
    $region28: #{edge_update_forward.1} parent=1 // pred_region
      %46 = dma.done [#allocation3], 128
    $region29: #{edge_update_forward.1} parent=1 // pred_fallthru
      _
    // Predicated region
    $region30: #{edge_update_forward.1} parent=1 // pred_check
      _
    $region31: #{edge_update_forward.1} parent=1 // pred_check_branch
      %48 = sbr.rel (0) target = $region33
    $region32: #{edge_update_forward.1} parent=1 // pred_region
      %49 = dma.done [#allocation6], 512
    $region33: #{edge_update_forward.1} parent=1 // pred_fallthru
      _
    %v50 = vld [vmem:[#allocation5] sm:$0xff]
    %v51 = vld [vmem:[#allocation5 + $0x8] sm:$0xff]
    %v52 = vld [vmem:[#allocation5 + $0x10] sm:$0xff]
    %v53 = vld [vmem:[#allocation5 + $0x18] sm:$0xff]
    %v54 = vld [vmem:[%s5] sm:$0x1]
    %v55 = vld [vmem:[%s1] sm:$0xff]
    %s56 = smul.u32 0, 8
    %s57 = scalar_lea.vmem %s2, %s56
    %v58 = vld [vmem:[%s57] sm:$0xff]
    %v59 = vld [vmem:[%s57 + $0x8] sm:$0xff]
    %v60 = vld [vmem:[%s57 + $0x10] sm:$0xff]
    %v61 = vld [vmem:[%s57 + $0x18] sm:$0xff]
    %v62 = vld [vmem:[%s57 + $0x20] sm:$0xff]
    %v63 = vld [vmem:[%s57 + $0x28] sm:$0xff]
    %v64 = vld [vmem:[%s57 + $0x30] sm:$0xff]
    %v65 = vld [vmem:[%s57 + $0x38] sm:$0xff]
    %v66 = vld [vmem:[#allocation2] sm:$0xff]
    %v67 = vlaneseq
    %v68 = vshrl.u32 %v67, 7
    %v69 = vsub.s32 0, %v68
    %v70 = vrot.slane %v66, %v69
    %72 = vbcast.lane.b32.xlu0 %v70, 256
    %v73 = vpop.permute.xlu0 %72
    %v74 = vlaneseq
    %v75 = vshrl.u32 %v74, 7
    %v76 = vsub.s32 1, %v75
    %v77 = vrot.slane %v66, %v76
    %79 = vbcast.lane.b32.xlu0 %v77, 256
    %v80 = vpop.permute.xlu0 %79
    %v81 = vlaneseq
    %v82 = vshrl.u32 %v81, 7
    %v83 = vsub.s32 2, %v82
    %v84 = vrot.slane %v66, %v83
    %86 = vbcast.lane.b32.xlu0 %v84, 256
    %v87 = vpop.permute.xlu0 %86
    %v88 = vlaneseq
    %v89 = vshrl.u32 %v88, 7
    %v90 = vsub.s32 3, %v89
    %v91 = vrot.slane %v66, %v90
    %93 = vbcast.lane.b32.xlu0 %v91, 256
    %v94 = vpop.permute.xlu0 %93
    %v95 = vlaneseq
    %v96 = vshrl.u32 %v95, 7
    %v97 = vsub.s32 4, %v96
    %v98 = vrot.slane %v66, %v97
    %100 = vbcast.lane.b32.xlu0 %v98, 256
    %v101 = vpop.permute.xlu0 %100
    %v102 = vlaneseq
    %v103 = vshrl.u32 %v102, 7
    %v104 = vsub.s32 5, %v103
    %v105 = vrot.slane %v66, %v104
    %107 = vbcast.lane.b32.xlu0 %v105, 256
    %v108 = vpop.permute.xlu0 %107
    %v109 = vlaneseq
    %v110 = vshrl.u32 %v109, 7
    %v111 = vsub.s32 6, %v110
    %v112 = vrot.slane %v66, %v111
    %114 = vbcast.lane.b32.xlu0 %v112, 256
    %v115 = vpop.permute.xlu0 %114
    %v116 = vlaneseq
    %v117 = vshrl.u32 %v116, 7
    %v118 = vsub.s32 7, %v117
    %v119 = vrot.slane %v66, %v118
    %121 = vbcast.lane.b32.xlu0 %v119, 256
    %v122 = vpop.permute.xlu0 %121
    %v123 = vld [vmem:[%s0] sm:$0xff]
    %v125 = vcombine.high %v123, %v123
    %v127 = vunpack.c.l.s4 1966171168
    %v128 = vunpack.c.0.s8 %v127
    %v129 = vlaneseq
    %v130 = vshrl.u32 %v129, 7
    %v131 = vsub.s32 %v128, %v130
    %v132 = vrot.slane %v123, %v131
    %v134 = vunpack.c.l.s4 1966171168
    %v135 = vunpack.c.0.s8 %v134
    %v136 = vlaneseq
    %v137 = vshrl.u32 %v136, 7
    %v138 = vsub.s32 %v135, %v137
    %v139 = vrot.slane %v125, %v138
    %v140 = vcombine.high %v132, %v132
    %v141 = vcombine.high %v139, %v139
    %v143 = vunpack.c.l.s4 1966171168
    %v144 = vunpack.c.0.s8 %v143
    %v145 = vlaneseq
    %v146 = vshrl.u32 %v145, 7
    %v147 = vsub.s32 %v144, %v146
    %v148 = vrot.slane %v132, %v147
    %v150 = vunpack.c.l.s4 1966171168
    %v151 = vunpack.c.0.s8 %v150
    %v152 = vlaneseq
    %v153 = vshrl.u32 %v152, 7
    %v154 = vsub.s32 %v151, %v153
    %v155 = vrot.slane %v139, %v154
    %v157 = vunpack.c.l.s4 1966171168
    %v158 = vunpack.c.0.s8 %v157
    %v159 = vlaneseq
    %v160 = vshrl.u32 %v159, 7
    %v161 = vsub.s32 %v158, %v160
    %v162 = vrot.slane %v140, %v161
    %v164 = vunpack.c.l.s4 1966171168
    %v165 = vunpack.c.0.s8 %v164
    %v166 = vlaneseq
    %v167 = vshrl.u32 %v166, 7
    %v168 = vsub.s32 %v165, %v167
    %v169 = vrot.slane %v141, %v168
    %v170 = vcombine.high %v148, %v148
    %v171 = vcombine.high %v155, %v155
    %v172 = vcombine.high %v162, %v162
    %v173 = vcombine.high %v169, %v169
    %v174 = vmul.f32 %v58, %v73
    %v175 = vmul.f32 %v59, %v80
    %v176 = vmul.f32 %v60, %v87
    %v177 = vmul.f32 %v61, %v94
    %v178 = vmul.f32 %v62, %v101
    %v179 = vmul.f32 %v63, %v108
    %v180 = vmul.f32 %v64, %v115
    %v181 = vmul.f32 %v65, %v122
    %vm182 = vcmask 261120
    %v184 = vsel %vm182, %v174, 0
    %v187 = vsel %vm182, %v175, 0
    %v190 = vsel %vm182, %v176, 0
    %v193 = vsel %vm182, %v177, 0
    %v196 = vsel %vm182, %v178, 0
    %v199 = vsel %vm182, %v179, 0
    %v202 = vsel %vm182, %v180, 0
    %v205 = vsel %vm182, %v181, 0
    %207 = vmatprep.subr.mxu0 0.0
    %208 = vmatpush1.msra.mxu0 %v50
    %209 = vmatprep.subr.mxu0 0.0
    %210 = vmatpush1.msra.mxu0 %v51
    %211 = vmatprep.subr.mxu0 0.0
    %212 = vmatpush1.msra.mxu0 %v52
    %213 = vmatprep.subr.mxu0 0.0
    %214 = vmatpush1.msra.mxu0 %v53
    %215 = vmatprep.subr.mxu0 0.0
    %216 = vmatpush1.msra.mxu0 0.0
    %217 = vmatprep.subr.mxu0 0.0
    %218 = vmatpush1.msra.mxu0 0.0
    %219 = vmatprep.subr.mxu0 0.0
    %220 = vmatpush1.msra.mxu0 0.0
    %221 = vmatprep.subr.mxu0 0.0
    %222 = vmatpush1.msra.mxu0 0.0
    %223 = vmatprep.subr.mxu0 0.0
    %224 = vmatpush1.msra.mxu0 0.0
    %225 = vmatprep.subr.mxu0 0.0
    %226 = vmatpush1.msra.mxu0 0.0
    %227 = vmatprep.subr.mxu0 0.0
    %228 = vmatpush1.msra.mxu0 0.0
    %229 = vmatprep.subr.mxu0 0.0
    %230 = vmatpush1.msra.mxu0 0.0
    %231 = vmatprep.subr.mxu0 0.0
    %232 = vmatpush1.msra.mxu0 0.0
    %233 = vmatprep.subr.mxu0 0.0
    %234 = vmatpush1.msra.mxu0 0.0
    %235 = vmatprep.subr.mxu0 0.0
    %236 = vmatpush1.msra.mxu0 0.0
    %237 = vmatprep.subr.mxu0 0.0
    %238 = vmatpush1.msra.mxu0 0.0
    %239 = vmatprep.subr.mxu0 0.0
    %240 = vmatpush1.msra.mxu0 0.0
    %241 = vmatprep.subr.mxu0 0.0
    %242 = vmatpush1.msra.mxu0 0.0
    %243 = vmatprep.subr.mxu0 0.0
    %244 = vmatpush1.msra.mxu0 0.0
    %245 = vmatprep.subr.mxu0 0.0
    %246 = vmatpush1.msra.mxu0 0.0
    %247 = vmatprep.subr.mxu0 0.0
    %248 = vmatpush1.msra.mxu0 0.0
    %249 = vmatprep.subr.mxu0 0.0
    %250 = vmatpush1.msra.mxu0 0.0
    %251 = vmatprep.subr.mxu0 0.0
    %252 = vmatpush1.msra.mxu0 0.0
    %253 = vmatprep.subr.mxu0 0.0
    %254 = vmatpush1.msra.mxu0 0.0
    %255 = vmatprep.subr.mxu0 0.0
    %256 = vmatpush1.msra.mxu0 0.0
    %257 = vmatprep.subr.mxu0 0.0
    %258 = vmatpush1.msra.mxu0 0.0
    %259 = vmatprep.subr.mxu0 0.0
    %260 = vmatpush1.msra.mxu0 0.0
    %261 = vmatprep.subr.mxu0 0.0
    %262 = vmatpush1.msra.mxu0 0.0
    %263 = vmatprep.subr.mxu0 0.0
    %264 = vmatpush1.msra.mxu0 0.0
    %265 = vmatprep.subr.mxu0 0.0
    %266 = vmatpush1.msra.mxu0 0.0
    %267 = vmatprep.subr.mxu0 0.0
    %268 = vmatpush1.msra.mxu0 0.0
    %269 = vmatprep.subr.mxu0 0.0
    %270 = vmatpush1.msra.mxu0 0.0
    %271 = vmatprep.mubr.f32.mxu0 0.0
    %272 = vmatmul.mubr.f32.gmra.mrb[0].mxu0 %v184
    %v273 = vpop.f32.mrb[0].mxu0
    %v274 = vadd.f32 0.0, %v273
    %v275 = vpop.f32.mrb[0].mxu0
    %276 = vmatprep.mubr.f32.mxu0 0.0
    %277 = vmatmul.mubr.f32.gmra.mrb[0].mxu0 %v187
    %v278 = vpop.f32.mrb[0].mxu0
    %v279 = vadd.f32 0.0, %v278
    %v280 = vpop.f32.mrb[0].mxu0
    %281 = vmatprep.mubr.f32.mxu0 0.0
    %282 = vmatmul.mubr.f32.gmra.mrb[0].mxu0 %v190
    %v283 = vpop.f32.mrb[0].mxu0
    %v284 = vadd.f32 0.0, %v283
    %v285 = vpop.f32.mrb[0].mxu0
    %286 = vmatprep.mubr.f32.mxu0 0.0
    %287 = vmatmul.mubr.f32.gmra.mrb[0].mxu0 %v193
    %v288 = vpop.f32.mrb[0].mxu0
    %v289 = vadd.f32 0.0, %v288
    %v290 = vpop.f32.mrb[0].mxu0
    %291 = vmatprep.mubr.f32.mxu0 0.0
    %292 = vmatmul.mubr.f32.gmra.mrb[0].mxu0 %v196
    %v293 = vpop.f32.mrb[0].mxu0
    %v294 = vadd.f32 0.0, %v293
    %v295 = vpop.f32.mrb[0].mxu0
    %296 = vmatprep.mubr.f32.mxu0 0.0
    %297 = vmatmul.mubr.f32.gmra.mrb[0].mxu0 %v199
    %v298 = vpop.f32.mrb[0].mxu0
    %v299 = vadd.f32 0.0, %v298
    %v300 = vpop.f32.mrb[0].mxu0
    %301 = vmatprep.mubr.f32.mxu0 0.0
    %302 = vmatmul.mubr.f32.gmra.mrb[0].mxu0 %v202
    %v303 = vpop.f32.mrb[0].mxu0
    %v304 = vadd.f32 0.0, %v303
    %v305 = vpop.f32.mrb[0].mxu0
    %306 = vmatprep.mubr.f32.mxu0 0.0
    %307 = vmatmul.mubr.f32.gmra.mrb[0].mxu0 %v205
    %v308 = vpop.f32.mrb[0].mxu0
    %v309 = vadd.f32 0.0, %v308
    %v310 = vpop.f32.mrb[0].mxu0
    %311 = vdwg.mxu0
    %v312 = vlaneseq
    %v313 = vshrl.u32 %v312, 7
    %v314 = vsub.s32 0, %v313
    %v315 = vrot.slane %v148, %v314
    %v316 = vlaneseq
    %v317 = vshrl.u32 %v316, 7
    %v318 = vsub.s32 0, %v317
    %v319 = vrot.slane %v162, %v318
    %v320 = vlaneseq
    %v321 = vshrl.u32 %v320, 7
    %v322 = vsub.s32 0, %v321
    %v323 = vrot.slane %v170, %v322
    %v324 = vlaneseq
    %v325 = vshrl.u32 %v324, 7
    %v326 = vsub.s32 0, %v325
    %v327 = vrot.slane %v172, %v326
    %v328 = vlaneseq
    %v329 = vshrl.u32 %v328, 7
    %v330 = vsub.s32 0, %v329
    %v331 = vrot.slane %v155, %v330
    %v332 = vlaneseq
    %v333 = vshrl.u32 %v332, 7
    %v334 = vsub.s32 0, %v333
    %v335 = vrot.slane %v169, %v334
    %v336 = vlaneseq
    %v337 = vshrl.u32 %v336, 7
    %v338 = vsub.s32 0, %v337
    %v339 = vrot.slane %v171, %v338
    %v340 = vlaneseq
    %v341 = vshrl.u32 %v340, 7
    %v342 = vsub.s32 0, %v341
    %v343 = vrot.slane %v173, %v342
    %v352 = vadd.f32 %v274, %v315
    %v353 = vadd.f32 %v279, %v319
    %v354 = vadd.f32 %v284, %v323
    %v355 = vadd.f32 %v289, %v327
    %v356 = vadd.f32 %v294, %v331
    %v357 = vadd.f32 %v299, %v335
    %v358 = vadd.f32 %v304, %v339
    %v359 = vadd.f32 %v309, %v343
    %v360 = vadd.f32 %v352, %v55
    %v361 = vadd.f32 %v353, %v55
    %v362 = vadd.f32 %v354, %v55
    %v363 = vadd.f32 %v355, %v55
    %v364 = vadd.f32 %v356, %v55
    %v365 = vadd.f32 %v357, %v55
    %v366 = vadd.f32 %v358, %v55
    %v367 = vadd.f32 %v359, %v55
    %v368 = vxor.u32 %v360, 2147483648
    %v369 = vxor.u32 %v361, 2147483648
    %v370 = vxor.u32 %v362, 2147483648
    %v371 = vxor.u32 %v363, 2147483648
    %v372 = vxor.u32 %v364, 2147483648
    %v373 = vxor.u32 %v365, 2147483648
    %v374 = vxor.u32 %v366, 2147483648
    %v375 = vxor.u32 %v367, 2147483648
    %v376 = vmul.f32 %v368, 1.442695
    %v377 = vpow.pop %v376
    %v378 = vmul.f32 %v369, 1.442695
    %v379 = vpow.pop %v378
    %v380 = vmul.f32 %v370, 1.442695
    %v381 = vpow.pop %v380
    %v382 = vmul.f32 %v371, 1.442695
    %v383 = vpow.pop %v382
    %v384 = vmul.f32 %v372, 1.442695
    %v385 = vpow.pop %v384
    %v386 = vmul.f32 %v373, 1.442695
    %v387 = vpow.pop %v386
    %v388 = vmul.f32 %v374, 1.442695
    %v389 = vpow.pop %v388
    %v390 = vmul.f32 %v375, 1.442695
    %v391 = vpow.pop %v390
    %v392 = vadd.f32 %v377, 1.0
    %v393 = vadd.f32 %v379, 1.0
    %v394 = vadd.f32 %v381, 1.0
    %v395 = vadd.f32 %v383, 1.0
    %v396 = vadd.f32 %v385, 1.0
    %v397 = vadd.f32 %v387, 1.0
    %v398 = vadd.f32 %v389, 1.0
    %v399 = vadd.f32 %v391, 1.0
    %v400 = vrcp.pop %v392
    %v401 = vmul.f32 1.0, %v400
    %v402 = vrcp.pop %v393
    %v403 = vmul.f32 1.0, %v402
    %v404 = vrcp.pop %v394
    %v405 = vmul.f32 1.0, %v404
    %v406 = vrcp.pop %v395
    %v407 = vmul.f32 1.0, %v406
    %v408 = vrcp.pop %v396
    %v409 = vmul.f32 1.0, %v408
    %v410 = vrcp.pop %v397
    %v411 = vmul.f32 1.0, %v410
    %v412 = vrcp.pop %v398
    %v413 = vmul.f32 1.0, %v412
    %v414 = vrcp.pop %v399
    %v415 = vmul.f32 1.0, %v414
    %v416 = vadd.f32 %v315, %v55
    %v417 = vadd.f32 %v319, %v55
    %v418 = vadd.f32 %v323, %v55
    %v419 = vadd.f32 %v327, %v55
    %v420 = vadd.f32 %v331, %v55
    %v421 = vadd.f32 %v335, %v55
    %v422 = vadd.f32 %v339, %v55
    %v423 = vadd.f32 %v343, %v55
    %v425 = vlaneseq
    %v426 = vshrl.u32 %v425, 7
    %v427 = vsub.s32 0, %v426
    %v428 = vrot.slane %v54, %v427
    %429 = vrot.lane.b32.xlu0 %v428, 64
    %v430 = vpop.permute.xlu0 %429
    %v432 = vadd.f32 %v274, %v430
    %v433 = vadd.f32 %v279, %v430
    %v434 = vadd.f32 %v284, %v430
    %v435 = vadd.f32 %v289, %v430
    %v436 = vadd.f32 %v294, %v430
    %v437 = vadd.f32 %v299, %v430
    %v438 = vadd.f32 %v304, %v430
    %v439 = vadd.f32 %v309, %v430
    %448 = vrot.lane.b32.xlu0 %v432, 64
    %v449 = vpop.permute.xlu0 %448
    %450 = vrot.lane.b32.xlu0 %v433, 64
    %v451 = vpop.permute.xlu0 %450
    %452 = vrot.lane.b32.xlu0 %v434, 64
    %v453 = vpop.permute.xlu0 %452
    %454 = vrot.lane.b32.xlu0 %v435, 64
    %v455 = vpop.permute.xlu0 %454
    %456 = vrot.lane.b32.xlu0 %v436, 64
    %v457 = vpop.permute.xlu0 %456
    %458 = vrot.lane.b32.xlu0 %v437, 64
    %v459 = vpop.permute.xlu0 %458
    %460 = vrot.lane.b32.xlu0 %v438, 64
    %v461 = vpop.permute.xlu0 %460
    %462 = vrot.lane.b32.xlu0 %v439, 64
    %v463 = vpop.permute.xlu0 %462
    %v472 = vmul.f32 %v401, %v449
    %v473 = vmul.f32 %v403, %v451
    %v474 = vmul.f32 %v405, %v453
    %v475 = vmul.f32 %v407, %v455
    %v476 = vmul.f32 %v409, %v457
    %v477 = vmul.f32 %v411, %v459
    %v478 = vmul.f32 %v413, %v461
    %v479 = vmul.f32 %v415, %v463
    %488 = vrot.lane.b32.xlu0 %v472, 64
    %v489 = vpop.permute.xlu0 %488
    %490 = vrot.lane.b32.xlu0 %v473, 64
    %v491 = vpop.permute.xlu0 %490
    %492 = vrot.lane.b32.xlu0 %v474, 64
    %v493 = vpop.permute.xlu0 %492
    %494 = vrot.lane.b32.xlu0 %v475, 64
    %v495 = vpop.permute.xlu0 %494
    %496 = vrot.lane.b32.xlu0 %v476, 64
    %v497 = vpop.permute.xlu0 %496
    %498 = vrot.lane.b32.xlu0 %v477, 64
    %v499 = vpop.permute.xlu0 %498
    %500 = vrot.lane.b32.xlu0 %v478, 64
    %v501 = vpop.permute.xlu0 %500
    %502 = vrot.lane.b32.xlu0 %v479, 64
    %v503 = vpop.permute.xlu0 %502
    %v512 = vadd.f32 %v416, %v489
    %v513 = vadd.f32 %v417, %v491
    %v514 = vadd.f32 %v418, %v493
    %v515 = vadd.f32 %v419, %v495
    %v516 = vadd.f32 %v420, %v497
    %v517 = vadd.f32 %v421, %v499
    %v518 = vadd.f32 %v422, %v501
    %v519 = vadd.f32 %v423, %v503
    %v520 = vtanh.pop %v512
    %v521 = vtanh.pop %v513
    %v522 = vtanh.pop %v514
    %v523 = vtanh.pop %v515
    %v524 = vtanh.pop %v516
    %v525 = vtanh.pop %v517
    %v526 = vtanh.pop %v518
    %v527 = vtanh.pop %v519
    %536 = vrot.lane.b32.xlu0 %v520, 64
    %v537 = vpop.permute.xlu0 %536
    %538 = vrot.lane.b32.xlu0 %v521, 64
    %v539 = vpop.permute.xlu0 %538
    %540 = vrot.lane.b32.xlu0 %v522, 64
    %v541 = vpop.permute.xlu0 %540
    %542 = vrot.lane.b32.xlu0 %v523, 64
    %v543 = vpop.permute.xlu0 %542
    %544 = vrot.lane.b32.xlu0 %v524, 64
    %v545 = vpop.permute.xlu0 %544
    %546 = vrot.lane.b32.xlu0 %v525, 64
    %v547 = vpop.permute.xlu0 %546
    %548 = vrot.lane.b32.xlu0 %v526, 64
    %v549 = vpop.permute.xlu0 %548
    %550 = vrot.lane.b32.xlu0 %v527, 64
    %v551 = vpop.permute.xlu0 %550
    %v560 = vsub.f32 %v174, %v537
    %v561 = vsub.f32 %v175, %v539
    %v562 = vsub.f32 %v176, %v541
    %v563 = vsub.f32 %v177, %v543
    %v564 = vsub.f32 %v178, %v545
    %v565 = vsub.f32 %v179, %v547
    %v566 = vsub.f32 %v180, %v549
    %v567 = vsub.f32 %v181, %v551
    %576 = vrot.lane.b32.xlu0 %v560, 32
    %v577 = vpop.permute.xlu0 %576
    %578 = vrot.lane.b32.xlu0 %v561, 32
    %v579 = vpop.permute.xlu0 %578
    %580 = vrot.lane.b32.xlu0 %v562, 32
    %v581 = vpop.permute.xlu0 %580
    %582 = vrot.lane.b32.xlu0 %v563, 32
    %v583 = vpop.permute.xlu0 %582
    %584 = vrot.lane.b32.xlu0 %v564, 32
    %v585 = vpop.permute.xlu0 %584
    %586 = vrot.lane.b32.xlu0 %v565, 32
    %v587 = vpop.permute.xlu0 %586
    %588 = vrot.lane.b32.xlu0 %v566, 32
    %v589 = vpop.permute.xlu0 %588
    %590 = vrot.lane.b32.xlu0 %v567, 32
    %v591 = vpop.permute.xlu0 %590
    %v600 = vmul.f32 %v401, %v577
    %v601 = vmul.f32 %v403, %v579
    %v602 = vmul.f32 %v405, %v581
    %v603 = vmul.f32 %v407, %v583
    %v604 = vmul.f32 %v409, %v585
    %v605 = vmul.f32 %v411, %v587
    %v606 = vmul.f32 %v413, %v589
    %v607 = vmul.f32 %v415, %v591
    %616 = vrot.lane.b32.xlu0 %v600, 32
    %v617 = vpop.permute.xlu0 %616
    %618 = vrot.lane.b32.xlu0 %v601, 32
    %v619 = vpop.permute.xlu0 %618
    %620 = vrot.lane.b32.xlu0 %v602, 32
    %v621 = vpop.permute.xlu0 %620
    %622 = vrot.lane.b32.xlu0 %v603, 32
    %v623 = vpop.permute.xlu0 %622
    %624 = vrot.lane.b32.xlu0 %v604, 32
    %v625 = vpop.permute.xlu0 %624
    %626 = vrot.lane.b32.xlu0 %v605, 32
    %v627 = vpop.permute.xlu0 %626
    %628 = vrot.lane.b32.xlu0 %v606, 32
    %v629 = vpop.permute.xlu0 %628
    %630 = vrot.lane.b32.xlu0 %v607, 32
    %v631 = vpop.permute.xlu0 %630
    %v640 = vadd.f32 %v520, %v617
    %v641 = vadd.f32 %v521, %v619
    %v642 = vadd.f32 %v522, %v621
    %v643 = vadd.f32 %v523, %v623
    %v644 = vadd.f32 %v524, %v625
    %v645 = vadd.f32 %v525, %v627
    %v646 = vadd.f32 %v526, %v629
    %v647 = vadd.f32 %v527, %v631
    %656 = vrot.lane.b32.xlu0 %v640, 64
    %v657 = vpop.permute.xlu0 %656
    %658 = vrot.lane.b32.xlu0 %v641, 64
    %v659 = vpop.permute.xlu0 %658
    %660 = vrot.lane.b32.xlu0 %v642, 64
    %v661 = vpop.permute.xlu0 %660
    %662 = vrot.lane.b32.xlu0 %v643, 64
    %v663 = vpop.permute.xlu0 %662
    %664 = vrot.lane.b32.xlu0 %v644, 64
    %v665 = vpop.permute.xlu0 %664
    %666 = vrot.lane.b32.xlu0 %v645, 64
    %v667 = vpop.permute.xlu0 %666
    %668 = vrot.lane.b32.xlu0 %v646, 64
    %v669 = vpop.permute.xlu0 %668
    %670 = vrot.lane.b32.xlu0 %v647, 64
    %v671 = vpop.permute.xlu0 %670
    %s680 = scalar_lea.vmem [#allocation7], %s56
    %681 = vst.msk [vmem:[%s680] sm:$0xff] %vm182, %v657
    %682 = vst.msk [vmem:[%s680 + $0x8] sm:$0xff] %vm182, %v659
    %683 = vst.msk [vmem:[%s680 + $0x10] sm:$0xff] %vm182, %v661
    %684 = vst.msk [vmem:[%s680 + $0x18] sm:$0xff] %vm182, %v663
    %685 = vst.msk [vmem:[%s680 + $0x20] sm:$0xff] %vm182, %v665
    %686 = vst.msk [vmem:[%s680 + $0x28] sm:$0xff] %vm182, %v667
    %687 = vst.msk [vmem:[%s680 + $0x30] sm:$0xff] %vm182, %v669
    %688 = vst.msk [vmem:[%s680 + $0x38] sm:$0xff] %vm182, %v671
    // Predicated region
    $region34: #{edge_update_forward.1} parent=1 // pred_check
      _
    $region35: #{edge_update_forward.1} parent=1 // pred_check_branch
      %690 = sbr.rel (0) target = $region37
    $region36: #{edge_update_forward.1} parent=1 // pred_region
      %s692 = ssub.s32 1024, 1024
      %693 = vsyncadd [#allocation4], %s692
      %s694 = sshll.u32 [#allocation7], 4
      %s695 = int_to_ptr.vmem [resolvable:$true] %s694
      %700 = dma.vmem_to_hbm [thread:$0]  %s695, 1024, %s6, [#allocation4], 128, 128, 8
    $region37: #{edge_update_forward.1} parent=1 // pred_fallthru
      _
    // Predicated region
    $region38: #{edge_update_forward.1} parent=1 // pred_check
      _
    $region39: #{edge_update_forward.1} parent=1 // pred_check_branch
      %702 = sbr.rel (0) target = $region41
    $region40: #{edge_update_forward.1} parent=1 // pred_region
      %703 = dma.done [#allocation4], 1024
    $region41: #{edge_update_forward.1} parent=1 // pred_fallthru
      _
    %704 = vsyncpa [#allocation3], 1
    %705 = vsyncpa [#allocation6], 1
    %706 = vsyncpa [#allocation4], 1

</llo_original>
